<compile_context>
chip_gen: v7x
topology: tpu7x:2x2x1
jax: 0.10.0
libtpu: 0.0.40
codegen_flags: <defaults>
</compile_context>

<pallas_src>
import functools

import numpy as np

import jax
import jax.numpy as jnp
from jax.experimental import pallas as pl
from jax.experimental.pallas import tpu as pltpu


# --------------------------- host-side static tables ---------------------------

def _bilinear_matrix(n_in, n_out):
    """1-D bilinear interpolation matrix (align_corners=True), shape (n_out, n_in)."""
    a = np.zeros((n_out, n_in), np.float64)
    if n_in == 1 or n_out == 1:
        a[:, 0] = 1.0
        return a
    for o in range(n_out):
        s = o * (n_in - 1) / (n_out - 1)
        lo = int(np.floor(s))
        hi = min(lo + 1, n_in - 1)
        w = s - lo
        a[o, lo] += 1.0 - w
        a[o, hi] += w
    return a


def _upsample_pad_matrix(h1, w1, h2, w2):
    """(S1, S2) matrix M with  flat(x1) @ M == flat(F.pad(upsample_2x(x1) -> (h2, w2))).

    Handles both padding (diff > 0) and cropping (diff < 0), matching F.pad
    with [dX//2, dX - dX//2, dY//2, dY - dY//2] (Python floor division).
    """
    ho, wo = 2 * h1, 2 * w1
    ah = _bilinear_matrix(h1, ho)          # (ho, h1)
    aw = _bilinear_matrix(w1, wo)          # (wo, w1)
    pad_top = (h2 - ho) // 2
    pad_left = (w2 - wo) // 2
    bh = np.zeros((h2, h1), np.float64)
    for r in range(h2):
        src = r - pad_top
        if 0 <= src < ho:
            bh[r] = ah[src]
    bw = np.zeros((w2, w1), np.float64)
    for c in range(w2):
        src = c - pad_left
        if 0 <= src < wo:
            bw[c] = aw[src]
    m = np.kron(bh, bw)                    # (h2*w2, h1*w1): flat-dest x flat-src
    return np.ascontiguousarray(m.T).astype(np.float32)   # (S1, S2)


def _tap_masks(h, w):
    """(9, h*w) f32 validity masks for the 3x3 taps, ordered (dh, dw) row-major."""
    hh, ww = np.meshgrid(np.arange(h), np.arange(w), indexing="ij")
    hh, ww = hh.reshape(-1), ww.reshape(-1)
    masks = []
    for dh in (-1, 0, 1):
        for dw in (-1, 0, 1):
            ok = (hh + dh >= 0) & (hh + dh < h) & (ww + dw >= 0) & (ww + dw < w)
            masks.append(ok.astype(np.float32))
    return np.stack(masks, axis=0)


# --------------------------------- the kernel ----------------------------------

def _up_fused_kernel(x1_ref, x2_ref, up_ref, mask_ref,
                     w1_ref, g1_ref, bt1_ref,
                     w2_ref, g2_ref, bt2_ref,
                     o_ref, xpad_ref, col_ref,
                     *, n_img, c1, c2, shifts, margin, eps):
    """Whole Up block; all activations live in VMEM; batch folded into lanes.

    x1_ref : (N*C1, S1)          deeper feature, rows = (image, channel) pairs
    x2_ref : (C2, N*S2)          skip connection, channel-major, batch in lanes
    up_ref : (S1, S2)            combined bilinear-2x + pad interpolation matrix
    mask_ref: (9, N*S2)          per-tap validity masks for the 3x3 conv
    w*_ref : (Cout, 9*C_blk)     conv weights, tap-major, Cin zero-padded to C_blk
    g*/bt*_ref: (Cout, 1)        BN gamma / beta
    o_ref  : (Cout, N*S2)        lane-dense output
    xpad_ref: (C_blk, N*S2 + 2*margin)  zero-margined staging buffer (VMEM scratch)
    col_ref : (9*C_blk, N*S2)    im2col tap-stack (VMEM scratch)
    """
    c_blk = col_ref.shape[0] // 9
    ns2 = col_ref.shape[1]
    s2 = ns2 // n_img
    inv_ns = 1.0 / float(ns2)
    center = len(shifts) // 2

    # Zero the staging buffer once: the margins act as the conv zero halo and
    # channel rows beyond the real channel count stay zero for conv1.
    xpad_ref[...] = jnp.zeros_like(xpad_ref)

    # ---- stage torch.cat([x2, upsample(x1)], dim=1) in channel-major layout ----
    xpad_ref[0:c2, margin:margin + ns2] = x2_ref[...]
    # One batched interpolation matmul for the whole batch: (N*C1,S1)@(S1,S2).
    upres = jnp.dot(x1_ref[...], up_ref[...], preferred_element_type=jnp.float32)
    for i in range(n_img):   # tiny static de-interleave of (image, channel) rows
        xpad_ref[c2:c2 + c1, margin + i * s2:margin + (i + 1) * s2] = (
            upres[i * c1:(i + 1) * c1, :])

    def conv_bn_relu(w_packed, gamma, beta):
        """3x3 'same' conv as im2col + ONE MXU dot, then training-mode BN + ReLU."""
        # Build the tap-stack: one masked shifted-window store per tap; every
        # destination row block starts at a multiple of 8 sublanes.
        for t, off in enumerate(shifts):
            tap = xpad_ref[:, margin + off:margin + off + ns2]     # (C_blk, N*S2)
            if t != center:
                tap = tap * mask_ref[t:t + 1, :]
            col_ref[t * c_blk:(t + 1) * c_blk, :] = tap
        # Single dot per conv: (Cout, 9*C_blk) @ (9*C_blk, N*S2).
        y = jnp.dot(w_packed, col_ref[...], preferred_element_type=jnp.float32)
        # Training-mode BatchNorm2d: biased batch stats over (N, H, W) = lanes.
        mean = jnp.sum(y, axis=1, keepdims=True) * inv_ns
        d = y - mean
        var = jnp.sum(d * d, axis=1, keepdims=True) * inv_ns
        scale = jax.lax.rsqrt(var + eps) * gamma
        return jnp.maximum(d * scale + beta, 0.0)

    # conv1 -> BN -> ReLU
    h = conv_bn_relu(w1_ref[...], g1_ref[...], bt1_ref[...])      # (Cmid, N*S2)

    # Stage h for conv2 (rows >= Cmid hold stale-but-finite data; the packed
    # conv2 weights are zero there, so they contribute exactly 0).
    cmid = h.shape[0]
    xpad_ref[0:cmid, margin:margin + ns2] = h

    # conv2 -> BN -> ReLU; lane-dense store.
    o_ref[...] = conv_bn_relu(w2_ref[...], g2_ref[...], bt2_ref[...])


# --------------------------------- the wrapper ---------------------------------

def _full_spec(a):
    zeros = (0,) * a.ndim
    return pl.BlockSpec(a.shape, lambda i: zeros)


def up_forward(params, x1_nchw, x2_nchw, *, eps=1e-5):
    """Pallas implementation of Up.forward; inputs/outputs are NCHW float32."""
    n, c1, h1, w1 = x1_nchw.shape
    n2, c2, h2, w2 = x2_nchw.shape
    assert n2 == n
    cin = c1 + c2
    w1k, w2k = params["w1"], params["w2"]
    cmid, cout = w1k.shape[0], w2k.shape[0]
    assert w1k.shape[1] == cin and w2k.shape[1] == cmid
    s1, s2 = h1 * w1, h2 * w2
    ns2 = n * s2

    # Channel block: single padded Cin for both convs -> all im2col writes are
    # 8-sublane aligned and conv2 can safely reuse the staging buffer.
    c_blk = max(8, -(-max(cin, cmid) // 8) * 8)
    assert cin <= c_blk and cmid <= c_blk

    margin = 128                                  # lane-aligned halo
    assert margin >= w2 + 1, "halo too small for 3x3 taps"
    shifts = tuple(dh * w2 + dw for dh in (-1, 0, 1) for dw in (-1, 0, 1))

    f32 = jnp.float32
    # Static tables (constants under jit).
    up_mat = jnp.asarray(_upsample_pad_matrix(h1, w1, h2, w2))     # (S1, S2)
    masks = jnp.asarray(np.tile(_tap_masks(h2, w2), (1, n)))       # (9, N*S2)

    # Inputs: x1 as (N*C1, S1) (free reshape); x2 channel-major with batch in
    # lanes (tiny XLA transpose outside the kernel — layout plumbing only).
    x1f = x1_nchw.reshape(n * c1, s1).astype(f32)
    x2cm = jnp.transpose(x2_nchw.reshape(n, c2, s2),
                         (1, 0, 2)).reshape(c2, ns2).astype(f32)

    def pack_w(wk):
        """OIHW -> (Cout, 9*C_blk), tap-major, input channels zero-padded."""
        co, ci = wk.shape[0], wk.shape[1]
        wt = jnp.transpose(wk, (0, 2, 3, 1)).astype(f32)           # (co, kh, kw, ci)
        if ci < c_blk:
            wt = jnp.pad(wt, ((0, 0), (0, 0), (0, 0), (0, c_blk - ci)))
        return wt.reshape(co, 9 * c_blk)

    w1p, w2p = pack_w(w1k), pack_w(w2k)
    colv = lambda v: v.reshape(-1, 1).astype(f32)

    # NOTE: conv biases b1/b2 are intentionally NOT passed — training-mode
    # BatchNorm's mean subtraction cancels a per-channel constant bias exactly.
    args = (x1f, x2cm, up_mat, masks,
            w1p, colv(params["g1"]), colv(params["beta1"]),
            w2p, colv(params["g2"]), colv(params["beta2"]))

    flops = (2 * (n * c1) * s1 * s2                # upsample matmul
             + 2 * cmid * (9 * c_blk) * ns2        # conv1
             + 2 * cout * (9 * c_blk) * ns2)       # conv2
    bytes_accessed = sum(int(a.size) * 4 for a in args) + cout * ns2 * 4

    kernel = functools.partial(_up_fused_kernel, n_img=n, c1=c1, c2=c2,
                               shifts=shifts, margin=margin, eps=eps)
    out = pl.pallas_call(
        kernel,
        out_shape=jax.ShapeDtypeStruct((cout, ns2), f32),
        grid=(1,),
        in_specs=[_full_spec(a) for a in args],
        out_specs=pl.BlockSpec((cout, ns2), lambda i: (0, 0)),
        scratch_shapes=[pltpu.VMEM((c_blk, ns2 + 2 * margin), f32),
                        pltpu.VMEM((9 * c_blk, ns2), f32)],
        compiler_params=pltpu.CompilerParams(
            dimension_semantics=("arbitrary",)),
        cost_estimate=pl.CostEstimate(
            flops=flops, transcendentals=2 * (cmid + cout),
            bytes_accessed=bytes_accessed),
    )(*args)

    # (Cout, N*S2) -> NCHW via free reshape + tiny XLA transpose.
    return jnp.transpose(out.reshape(cout, n, s2),
                         (1, 0, 2)).reshape(n, cout, h2, w2)


# ----------------------------- params & reference ------------------------------

def init_up_params(key, in_channels, out_channels):
    """Deterministic synthetic parameters matching the PyTorch module shapes."""
    mid = in_channels // 2
    k1, k2 = jax.random.split(key)

    def conv_init(k, cin, cout):
        fan_in = cin * 9
        bound = 1.0 / float(np.sqrt(fan_in))
        wk, bk = jax.random.split(k)
        w = jax.random.uniform(wk, (cout, cin, 3, 3), jnp.float32, -bound, bound)
        b = jax.random.uniform(bk, (cout,), jnp.float32, -bound, bound)
        return w, b

    w1, b1 = conv_init(k1, in_channels, mid)
    w2, b2 = conv_init(k2, mid, out_channels)
    return dict(
        w1=w1, b1=b1, g1=jnp.ones((mid,), jnp.float32),
        beta1=jnp.zeros((mid,), jnp.float32),
        w2=w2, b2=b2, g2=jnp.ones((out_channels,), jnp.float32),
        beta2=jnp.zeros((out_channels,), jnp.float32),
    )


def _ref_up_forward(params, x1, x2, eps=1e-5):
    """Pure-JAX reference (gather upsample + lax.conv) used only for the self-check."""
    _, _, h1, w1 = x1.shape
    h2, w2 = x2.shape[2], x2.shape[3]
    ho, wo = 2 * h1, 2 * w1

    def coords(n_in, n_out):
        if n_in == 1:
            return jnp.zeros((n_out,), jnp.float32)
        return jnp.arange(n_out, dtype=jnp.float32) * ((n_in - 1) / (n_out - 1))

    ys, xs = coords(h1, ho), coords(w1, wo)
    y0 = jnp.floor(ys).astype(jnp.int32)
    x0 = jnp.floor(xs).astype(jnp.int32)
    y1 = jnp.minimum(y0 + 1, h1 - 1)
    x1i = jnp.minimum(x0 + 1, w1 - 1)
    wy = (ys - y0.astype(jnp.float32))[None, None, :, None]
    wx = (xs - x0.astype(jnp.float32))[None, None, None, :]

    def gather(yi, xi):
        return x1[:, :, yi][:, :, :, xi]

    up = (gather(y0, x0) * (1 - wy) * (1 - wx)
          + gather(y0, x1i) * (1 - wy) * wx
          + gather(y1, x0) * wy * (1 - wx)
          + gather(y1, x1i) * wy * wx)
    dy, dx = h2 - ho, w2 - wo
    up = jnp.pad(up, ((0, 0), (0, 0),
                      (dy // 2, dy - dy // 2), (dx // 2, dx - dx // 2)))
    x = jnp.concatenate([x2, up], axis=1)

    def conv_bn_relu(v, w, b, gamma, beta):
        y = jax.lax.conv_general_dilated(
            v, w, (1, 1), "SAME",
            dimension_numbers=("NCHW", "OIHW", "NCHW"),
            precision=jax.lax.Precision.HIGHEST)
        y = y + b[None, :, None, None]            # bias kept here; cancels in BN
        mean = y.mean(axis=(0, 2, 3), keepdims=True)
        var = ((y - mean) ** 2).mean(axis=(0, 2, 3), keepdims=True)
        y = (y - mean) * jax.lax.rsqrt(var + eps)
        return jnp.maximum(y * gamma[None, :, None, None]
                           + beta[None, :, None, None], 0.0)

    h = conv_bn_relu(x, params["w1"], params["b1"], params["g1"], params["beta1"])
    return conv_bn_relu(h, params["w2"], params["b2"], params["g2"], params["beta2"])


# ------------------------------------ main -------------------------------------

if __name__ == "__main__":
    # Up(in_channels=8, out_channels=4, bilinear=True)
    # x1: deeper feature (N, in//2, H/2, W/2); x2: skip connection (N, in//2, H, W).
    in_channels, out_channels = 8, 4
    key = jax.random.PRNGKey(0)
    kp, ka, kb = jax.random.split(key, 3)

    params = init_up_params(kp, in_channels, out_channels)
    x1 = jax.random.normal(ka, (2, in_channels // 2, 8, 8), jnp.float32)
    x2 = jax.random.normal(kb, (2, in_channels // 2, 16, 16), jnp.float32)

    out = jax.jit(up_forward)(params, x1, x2)
    out = jax.block_until_ready(out)
    assert out.shape == (2, out_channels, 16, 16), out.shape

    ref = _ref_up_forward(params, x1, x2)
    err = float(jnp.max(jnp.abs(out - ref)))
    assert err < 1e-3, f"max abs error vs pure-JAX reference: {err}"

    print("KERNEL_OK")
</pallas_src>

<mosaic_0001>
module attributes {stable_mosaic.version = 11 : i64} {
  func.func @_up_fused_kernel(%arg0: i32, %arg1: memref<8x64xf32, #tpu.memory_space<vmem>>, %arg2: memref<4x512xf32, #tpu.memory_space<vmem>>, %arg3: memref<64x256xf32, #tpu.memory_space<vmem>>, %arg4: memref<9x512xf32, #tpu.memory_space<vmem>>, %arg5: memref<4x72xf32, #tpu.memory_space<vmem>>, %arg6: memref<4x1xf32, #tpu.memory_space<vmem>>, %arg7: memref<4x1xf32, #tpu.memory_space<vmem>>, %arg8: memref<4x72xf32, #tpu.memory_space<vmem>>, %arg9: memref<4x1xf32, #tpu.memory_space<vmem>>, %arg10: memref<4x1xf32, #tpu.memory_space<vmem>>, %arg11: memref<4x512xf32, #tpu.memory_space<vmem>>, %arg12: memref<8x768xf32, #tpu.memory_space<vmem>>, %arg13: memref<72x512xf32, #tpu.memory_space<vmem>>) attributes {dimension_semantics = [#tpu.dimension_semantics<arbitrary>], iteration_bounds = array<i64: 1>, scalar_prefetch = 0 : i64, scratch_operands = 2 : i64, tpu.core_type = #tpu.core_type<tc>, window_params = [{pipeline_mode = #tpu.pipeline_mode<synchronous>, transform_indices = @transform_0, window_bounds = array<i64: 8, 64>}, {pipeline_mode = #tpu.pipeline_mode<synchronous>, transform_indices = @transform_1, window_bounds = array<i64: 4, 512>}, {pipeline_mode = #tpu.pipeline_mode<synchronous>, transform_indices = @transform_2, window_bounds = array<i64: 64, 256>}, {pipeline_mode = #tpu.pipeline_mode<synchronous>, transform_indices = @transform_3, window_bounds = array<i64: 9, 512>}, {pipeline_mode = #tpu.pipeline_mode<synchronous>, transform_indices = @transform_4, window_bounds = array<i64: 4, 72>}, {pipeline_mode = #tpu.pipeline_mode<synchronous>, transform_indices = @transform_5, window_bounds = array<i64: 4, 1>}, {pipeline_mode = #tpu.pipeline_mode<synchronous>, transform_indices = @transform_6, window_bounds = array<i64: 4, 1>}, {pipeline_mode = #tpu.pipeline_mode<synchronous>, transform_indices = @transform_7, window_bounds = array<i64: 4, 72>}, {pipeline_mode = #tpu.pipeline_mode<synchronous>, transform_indices = @transform_8, window_bounds = array<i64: 4, 1>}, {pipeline_mode = #tpu.pipeline_mode<synchronous>, transform_indices = @transform_9, window_bounds = array<i64: 4, 1>}, {pipeline_mode = #tpu.pipeline_mode<synchronous>, transform_indices = @transform_10, window_bounds = array<i64: 4, 512>}]} {
    %cst = arith.constant 0.000000e+00 : f32
    %0 = vector.broadcast %cst : f32 to vector<8x768xf32>
    %c0 = arith.constant 0 : index
    %c0_0 = arith.constant 0 : index
    %1 = vector.load %arg12[%c0, %c0_0] : memref<8x768xf32, #tpu.memory_space<vmem>>, vector<8x768xf32>
    tpu.vector_store %arg12[%c0, %c0_0], %0 {strides = array<i32>} : memref<8x768xf32, #tpu.memory_space<vmem>>, vector<8x768xf32>,
    %c0_1 = arith.constant 0 : index
    %c0_2 = arith.constant 0 : index
    %2 = vector.load %arg2[%c0_1, %c0_2] : memref<4x512xf32, #tpu.memory_space<vmem>>, vector<4x512xf32>
    %c0_3 = arith.constant 0 : index
    %c128 = arith.constant 128 : index
    %3 = vector.load %arg12[%c0_3, %c128] : memref<8x768xf32, #tpu.memory_space<vmem>>, vector<4x512xf32>
    tpu.vector_store %arg12[%c0_3, %c128], %2 {strides = array<i32>} : memref<8x768xf32, #tpu.memory_space<vmem>>, vector<4x512xf32>,
    %c0_4 = arith.constant 0 : index
    %c0_5 = arith.constant 0 : index
    %4 = vector.load %arg1[%c0_4, %c0_5] : memref<8x64xf32, #tpu.memory_space<vmem>>, vector<8x64xf32>
    %c0_6 = arith.constant 0 : index
    %c0_7 = arith.constant 0 : index
    %5 = vector.load %arg3[%c0_6, %c0_7] : memref<64x256xf32, #tpu.memory_space<vmem>>, vector<64x256xf32>
    %cst_8 = arith.constant dense<0.000000e+00> : vector<8x256xf32>
    %6 = tpu.matmul %4, %5, %cst_8 {dimension_numbers = #tpu.dot_dimension_numbers<[1], [0], [0], [1], [0, 0, 1, 1], [], []>} : vector<8x64xf32>, vector<64x256xf32>, vector<8x256xf32> -> vector<8x256xf32>
    %7 = vector.extract_strided_slice %6 {offsets = [0, 0], sizes = [4, 256], strides = [1, 1]} : vector<8x256xf32> to vector<4x256xf32>
    %c4 = arith.constant 4 : index
    %c128_9 = arith.constant 128 : index
    %8 = vector.load %arg12[%c4, %c128_9] : memref<8x768xf32, #tpu.memory_space<vmem>>, vector<4x256xf32>
    tpu.vector_store %arg12[%c4, %c128_9], %7 {strides = array<i32>} : memref<8x768xf32, #tpu.memory_space<vmem>>, vector<4x256xf32>,
    %9 = vector.extract_strided_slice %6 {offsets = [4, 0], sizes = [4, 256], strides = [1, 1]} : vector<8x256xf32> to vector<4x256xf32>
    %c4_10 = arith.constant 4 : index
    %c384 = arith.constant 384 : index
    %10 = vector.load %arg12[%c4_10, %c384] : memref<8x768xf32, #tpu.memory_space<vmem>>, vector<4x256xf32>
    tpu.vector_store %arg12[%c4_10, %c384], %9 {strides = array<i32>} : memref<8x768xf32, #tpu.memory_space<vmem>>, vector<4x256xf32>,
    %c0_11 = arith.constant 0 : index
    %c0_12 = arith.constant 0 : index
    %11 = vector.load %arg5[%c0_11, %c0_12] : memref<4x72xf32, #tpu.memory_space<vmem>>, vector<4x72xf32>
    %c0_13 = arith.constant 0 : index
    %c0_14 = arith.constant 0 : index
    %12 = vector.load %arg6[%c0_13, %c0_14] : memref<4x1xf32, #tpu.memory_space<vmem>>, vector<4x1xf32>
    %c0_15 = arith.constant 0 : index
    %c0_16 = arith.constant 0 : index
    %13 = vector.load %arg7[%c0_15, %c0_16] : memref<4x1xf32, #tpu.memory_space<vmem>>, vector<4x1xf32>
    %c0_17 = arith.constant 0 : index
    %c111 = arith.constant 111 : index
    %14 = vector.load %arg12[%c0_17, %c111] : memref<8x768xf32, #tpu.memory_space<vmem>>, vector<8x512xf32>
    %c0_18 = arith.constant 0 : index
    %c0_19 = arith.constant 0 : index
    %15 = vector.load %arg4[%c0_18, %c0_19] : memref<9x512xf32, #tpu.memory_space<vmem>>, vector<1x512xf32>
    %16 = vector.broadcast %15 : vector<1x512xf32> to vector<8x512xf32>
    %17 = arith.mulf %14, %16 : vector<8x512xf32>
    %c0_20 = arith.constant 0 : index
    %c0_21 = arith.constant 0 : index
    %18 = vector.load %arg13[%c0_20, %c0_21] : memref<72x512xf32, #tpu.memory_space<vmem>>, vector<8x512xf32>
    tpu.vector_store %arg13[%c0_20, %c0_21], %17 {strides = array<i32>} : memref<72x512xf32, #tpu.memory_space<vmem>>, vector<8x512xf32>,
    %c0_22 = arith.constant 0 : index
    %c112 = arith.constant 112 : index
    %19 = vector.load %arg12[%c0_22, %c112] : memref<8x768xf32, #tpu.memory_space<vmem>>, vector<8x512xf32>
    %c1 = arith.constant 1 : index
    %c0_23 = arith.constant 0 : index
    %20 = vector.load %arg4[%c1, %c0_23] : memref<9x512xf32, #tpu.memory_space<vmem>>, vector<1x512xf32>
    %21 = vector.broadcast %20 : vector<1x512xf32> to vector<8x512xf32>
    %22 = arith.mulf %19, %21 : vector<8x512xf32>
    %c8 = arith.constant 8 : index
    %c0_24 = arith.constant 0 : index
    %23 = vector.load %arg13[%c8, %c0_24] : memref<72x512xf32, #tpu.memory_space<vmem>>, vector<8x512xf32>
    tpu.vector_store %arg13[%c8, %c0_24], %22 {strides = array<i32>} : memref<72x512xf32, #tpu.memory_space<vmem>>, vector<8x512xf32>,
    %c0_25 = arith.constant 0 : index
    %c113 = arith.constant 113 : index
    %24 = vector.load %arg12[%c0_25, %c113] : memref<8x768xf32, #tpu.memory_space<vmem>>, vector<8x512xf32>
    %c2 = arith.constant 2 : index
    %c0_26 = arith.constant 0 : index
    %25 = vector.load %arg4[%c2, %c0_26] : memref<9x512xf32, #tpu.memory_space<vmem>>, vector<1x512xf32>
    %26 = vector.broadcast %25 : vector<1x512xf32> to vector<8x512xf32>
    %27 = arith.mulf %24, %26 : vector<8x512xf32>
    %c16 = arith.constant 16 : index
    %c0_27 = arith.constant 0 : index
    %28 = vector.load %arg13[%c16, %c0_27] : memref<72x512xf32, #tpu.memory_space<vmem>>, vector<8x512xf32>
    tpu.vector_store %arg13[%c16, %c0_27], %27 {strides = array<i32>} : memref<72x512xf32, #tpu.memory_space<vmem>>, vector<8x512xf32>,
    %c0_28 = arith.constant 0 : index
    %c127 = arith.constant 127 : index
    %29 = vector.load %arg12[%c0_28, %c127] : memref<8x768xf32, #tpu.memory_space<vmem>>, vector<8x512xf32>
    %c3 = arith.constant 3 : index
    %c0_29 = arith.constant 0 : index
    %30 = vector.load %arg4[%c3, %c0_29] : memref<9x512xf32, #tpu.memory_space<vmem>>, vector<1x512xf32>
    %31 = vector.broadcast %30 : vector<1x512xf32> to vector<8x512xf32>
    %32 = arith.mulf %29, %31 : vector<8x512xf32>
    %c24 = arith.constant 24 : index
    %c0_30 = arith.constant 0 : index
    %33 = vector.load %arg13[%c24, %c0_30] : memref<72x512xf32, #tpu.memory_space<vmem>>, vector<8x512xf32>
    tpu.vector_store %arg13[%c24, %c0_30], %32 {strides = array<i32>} : memref<72x512xf32, #tpu.memory_space<vmem>>, vector<8x512xf32>,
    %c0_31 = arith.constant 0 : index
    %c128_32 = arith.constant 128 : index
    %34 = vector.load %arg12[%c0_31, %c128_32] : memref<8x768xf32, #tpu.memory_space<vmem>>, vector<8x512xf32>
    %c32 = arith.constant 32 : index
    %c0_33 = arith.constant 0 : index
    %35 = vector.load %arg13[%c32, %c0_33] : memref<72x512xf32, #tpu.memory_space<vmem>>, vector<8x512xf32>
    tpu.vector_store %arg13[%c32, %c0_33], %34 {strides = array<i32>} : memref<72x512xf32, #tpu.memory_space<vmem>>, vector<8x512xf32>,
    %c0_34 = arith.constant 0 : index
    %c129 = arith.constant 129 : index
    %36 = vector.load %arg12[%c0_34, %c129] : memref<8x768xf32, #tpu.memory_space<vmem>>, vector<8x512xf32>
    %c5 = arith.constant 5 : index
    %c0_35 = arith.constant 0 : index
    %37 = vector.load %arg4[%c5, %c0_35] : memref<9x512xf32, #tpu.memory_space<vmem>>, vector<1x512xf32>
    %38 = vector.broadcast %37 : vector<1x512xf32> to vector<8x512xf32>
    %39 = arith.mulf %36, %38 : vector<8x512xf32>
    %c40 = arith.constant 40 : index
    %c0_36 = arith.constant 0 : index
    %40 = vector.load %arg13[%c40, %c0_36] : memref<72x512xf32, #tpu.memory_space<vmem>>, vector<8x512xf32>
    tpu.vector_store %arg13[%c40, %c0_36], %39 {strides = array<i32>} : memref<72x512xf32, #tpu.memory_space<vmem>>, vector<8x512xf32>,
    %c0_37 = arith.constant 0 : index
    %c143 = arith.constant 143 : index
    %41 = vector.load %arg12[%c0_37, %c143] : memref<8x768xf32, #tpu.memory_space<vmem>>, vector<8x512xf32>
    %c6 = arith.constant 6 : index
    %c0_38 = arith.constant 0 : index
    %42 = vector.load %arg4[%c6, %c0_38] : memref<9x512xf32, #tpu.memory_space<vmem>>, vector<1x512xf32>
    %43 = vector.broadcast %42 : vector<1x512xf32> to vector<8x512xf32>
    %44 = arith.mulf %41, %43 : vector<8x512xf32>
    %c48 = arith.constant 48 : index
    %c0_39 = arith.constant 0 : index
    %45 = vector.load %arg13[%c48, %c0_39] : memref<72x512xf32, #tpu.memory_space<vmem>>, vector<8x512xf32>
    tpu.vector_store %arg13[%c48, %c0_39], %44 {strides = array<i32>} : memref<72x512xf32, #tpu.memory_space<vmem>>, vector<8x512xf32>,
    %c0_40 = arith.constant 0 : index
    %c144 = arith.constant 144 : index
    %46 = vector.load %arg12[%c0_40, %c144] : memref<8x768xf32, #tpu.memory_space<vmem>>, vector<8x512xf32>
    %c7 = arith.constant 7 : index
    %c0_41 = arith.constant 0 : index
    %47 = vector.load %arg4[%c7, %c0_41] : memref<9x512xf32, #tpu.memory_space<vmem>>, vector<1x512xf32>
    %48 = vector.broadcast %47 : vector<1x512xf32> to vector<8x512xf32>
    %49 = arith.mulf %46, %48 : vector<8x512xf32>
    %c56 = arith.constant 56 : index
    %c0_42 = arith.constant 0 : index
    %50 = vector.load %arg13[%c56, %c0_42] : memref<72x512xf32, #tpu.memory_space<vmem>>, vector<8x512xf32>
    tpu.vector_store %arg13[%c56, %c0_42], %49 {strides = array<i32>} : memref<72x512xf32, #tpu.memory_space<vmem>>, vector<8x512xf32>,
    %c0_43 = arith.constant 0 : index
    %c145 = arith.constant 145 : index
    %51 = vector.load %arg12[%c0_43, %c145] : memref<8x768xf32, #tpu.memory_space<vmem>>, vector<8x512xf32>
    %c8_44 = arith.constant 8 : index
    %c0_45 = arith.constant 0 : index
    %52 = vector.load %arg4[%c8_44, %c0_45] : memref<9x512xf32, #tpu.memory_space<vmem>>, vector<1x512xf32>
    %53 = vector.broadcast %52 : vector<1x512xf32> to vector<8x512xf32>
    %54 = arith.mulf %51, %53 : vector<8x512xf32>
    %c64 = arith.constant 64 : index
    %c0_46 = arith.constant 0 : index
    %55 = vector.load %arg13[%c64, %c0_46] : memref<72x512xf32, #tpu.memory_space<vmem>>, vector<8x512xf32>
    tpu.vector_store %arg13[%c64, %c0_46], %54 {strides = array<i32>} : memref<72x512xf32, #tpu.memory_space<vmem>>, vector<8x512xf32>,
    %c0_47 = arith.constant 0 : index
    %c0_48 = arith.constant 0 : index
    %56 = vector.load %arg13[%c0_47, %c0_48] : memref<72x512xf32, #tpu.memory_space<vmem>>, vector<72x512xf32>
    %cst_49 = arith.constant dense<0.000000e+00> : vector<4x512xf32>
    %57 = tpu.matmul %11, %56, %cst_49 {dimension_numbers = #tpu.dot_dimension_numbers<[1], [0], [0], [1], [0, 0, 1, 1], [], []>} : vector<4x72xf32>, vector<72x512xf32>, vector<4x512xf32> -> vector<4x512xf32>
    %cst_50 = arith.constant dense<0.000000e+00> : vector<4xf32>
    %58 = vector.multi_reduction <add>, %57, %cst_50 [1] : vector<4x512xf32> to vector<4xf32>
    %59 = vector.shape_cast %58 : vector<4xf32> to vector<4x1xf32>
    %cst_51 = arith.constant 0.001953125 : f32
    %60 = vector.broadcast %cst_51 : f32 to vector<4x1xf32>
    %61 = arith.mulf %59, %60 : vector<4x1xf32>
    %62 = vector.broadcast %61 : vector<4x1xf32> to vector<4x512xf32>
    %63 = arith.subf %57, %62 : vector<4x512xf32>
    %64 = arith.mulf %63, %63 : vector<4x512xf32>
    %cst_52 = arith.constant dense<0.000000e+00> : vector<4xf32>
    %65 = vector.multi_reduction <add>, %64, %cst_52 [1] : vector<4x512xf32> to vector<4xf32>
    %66 = vector.shape_cast %65 : vector<4xf32> to vector<4x1xf32>
    %cst_53 = arith.constant 0.001953125 : f32
    %67 = vector.broadcast %cst_53 : f32 to vector<4x1xf32>
    %68 = arith.mulf %66, %67 : vector<4x1xf32>
    %cst_54 = arith.constant 9.99999974E-6 : f32
    %69 = vector.broadcast %cst_54 : f32 to vector<4x1xf32>
    %70 = arith.addf %68, %69 : vector<4x1xf32>
    %71 = math.rsqrt %70 : vector<4x1xf32>
    %72 = arith.mulf %71, %12 : vector<4x1xf32>
    %73 = vector.broadcast %72 : vector<4x1xf32> to vector<4x512xf32>
    %74 = arith.mulf %63, %73 : vector<4x512xf32>
    %75 = vector.broadcast %13 : vector<4x1xf32> to vector<4x512xf32>
    %76 = arith.addf %74, %75 : vector<4x512xf32>
    %cst_55 = arith.constant 0.000000e+00 : f32
    %77 = vector.broadcast %cst_55 : f32 to vector<4x512xf32>
    %78 = arith.maximumf %76, %77 : vector<4x512xf32>
    %c0_56 = arith.constant 0 : index
    %c128_57 = arith.constant 128 : index
    %79 = vector.load %arg12[%c0_56, %c128_57] : memref<8x768xf32, #tpu.memory_space<vmem>>, vector<4x512xf32>
    tpu.vector_store %arg12[%c0_56, %c128_57], %78 {strides = array<i32>} : memref<8x768xf32, #tpu.memory_space<vmem>>, vector<4x512xf32>,
    %c0_58 = arith.constant 0 : index
    %c0_59 = arith.constant 0 : index
    %80 = vector.load %arg8[%c0_58, %c0_59] : memref<4x72xf32, #tpu.memory_space<vmem>>, vector<4x72xf32>
    %c0_60 = arith.constant 0 : index
    %c0_61 = arith.constant 0 : index
    %81 = vector.load %arg9[%c0_60, %c0_61] : memref<4x1xf32, #tpu.memory_space<vmem>>, vector<4x1xf32>
    %c0_62 = arith.constant 0 : index
    %c0_63 = arith.constant 0 : index
    %82 = vector.load %arg10[%c0_62, %c0_63] : memref<4x1xf32, #tpu.memory_space<vmem>>, vector<4x1xf32>
    %c0_64 = arith.constant 0 : index
    %c111_65 = arith.constant 111 : index
    %83 = vector.load %arg12[%c0_64, %c111_65] : memref<8x768xf32, #tpu.memory_space<vmem>>, vector<8x512xf32>
    %c0_66 = arith.constant 0 : index
    %c0_67 = arith.constant 0 : index
    %84 = vector.load %arg4[%c0_66, %c0_67] : memref<9x512xf32, #tpu.memory_space<vmem>>, vector<1x512xf32>
    %85 = vector.broadcast %84 : vector<1x512xf32> to vector<8x512xf32>
    %86 = arith.mulf %83, %85 : vector<8x512xf32>
    %c0_68 = arith.constant 0 : index
    %c0_69 = arith.constant 0 : index
    %87 = vector.load %arg13[%c0_68, %c0_69] : memref<72x512xf32, #tpu.memory_space<vmem>>, vector<8x512xf32>
    tpu.vector_store %arg13[%c0_68, %c0_69], %86 {strides = array<i32>} : memref<72x512xf32, #tpu.memory_space<vmem>>, vector<8x512xf32>,
    %c0_70 = arith.constant 0 : index
    %c112_71 = arith.constant 112 : index
    %88 = vector.load %arg12[%c0_70, %c112_71] : memref<8x768xf32, #tpu.memory_space<vmem>>, vector<8x512xf32>
    %c1_72 = arith.constant 1 : index
    %c0_73 = arith.constant 0 : index
    %89 = vector.load %arg4[%c1_72, %c0_73] : memref<9x512xf32, #tpu.memory_space<vmem>>, vector<1x512xf32>
    %90 = vector.broadcast %89 : vector<1x512xf32> to vector<8x512xf32>
    %91 = arith.mulf %88, %90 : vector<8x512xf32>
    %c8_74 = arith.constant 8 : index
    %c0_75 = arith.constant 0 : index
    %92 = vector.load %arg13[%c8_74, %c0_75] : memref<72x512xf32, #tpu.memory_space<vmem>>, vector<8x512xf32>
    tpu.vector_store %arg13[%c8_74, %c0_75], %91 {strides = array<i32>} : memref<72x512xf32, #tpu.memory_space<vmem>>, vector<8x512xf32>,
    %c0_76 = arith.constant 0 : index
    %c113_77 = arith.constant 113 : index
    %93 = vector.load %arg12[%c0_76, %c113_77] : memref<8x768xf32, #tpu.memory_space<vmem>>, vector<8x512xf32>
    %c2_78 = arith.constant 2 : index
    %c0_79 = arith.constant 0 : index
    %94 = vector.load %arg4[%c2_78, %c0_79] : memref<9x512xf32, #tpu.memory_space<vmem>>, vector<1x512xf32>
    %95 = vector.broadcast %94 : vector<1x512xf32> to vector<8x512xf32>
    %96 = arith.mulf %93, %95 : vector<8x512xf32>
    %c16_80 = arith.constant 16 : index
    %c0_81 = arith.constant 0 : index
    %97 = vector.load %arg13[%c16_80, %c0_81] : memref<72x512xf32, #tpu.memory_space<vmem>>, vector<8x512xf32>
    tpu.vector_store %arg13[%c16_80, %c0_81], %96 {strides = array<i32>} : memref<72x512xf32, #tpu.memory_space<vmem>>, vector<8x512xf32>,
    %c0_82 = arith.constant 0 : index
    %c127_83 = arith.constant 127 : index
    %98 = vector.load %arg12[%c0_82, %c127_83] : memref<8x768xf32, #tpu.memory_space<vmem>>, vector<8x512xf32>
    %c3_84 = arith.constant 3 : index
    %c0_85 = arith.constant 0 : index
    %99 = vector.load %arg4[%c3_84, %c0_85] : memref<9x512xf32, #tpu.memory_space<vmem>>, vector<1x512xf32>
    %100 = vector.broadcast %99 : vector<1x512xf32> to vector<8x512xf32>
    %101 = arith.mulf %98, %100 : vector<8x512xf32>
    %c24_86 = arith.constant 24 : index
    %c0_87 = arith.constant 0 : index
    %102 = vector.load %arg13[%c24_86, %c0_87] : memref<72x512xf32, #tpu.memory_space<vmem>>, vector<8x512xf32>
    tpu.vector_store %arg13[%c24_86, %c0_87], %101 {strides = array<i32>} : memref<72x512xf32, #tpu.memory_space<vmem>>, vector<8x512xf32>,
    %c0_88 = arith.constant 0 : index
    %c128_89 = arith.constant 128 : index
    %103 = vector.load %arg12[%c0_88, %c128_89] : memref<8x768xf32, #tpu.memory_space<vmem>>, vector<8x512xf32>
    %c32_90 = arith.constant 32 : index
    %c0_91 = arith.constant 0 : index
    %104 = vector.load %arg13[%c32_90, %c0_91] : memref<72x512xf32, #tpu.memory_space<vmem>>, vector<8x512xf32>
    tpu.vector_store %arg13[%c32_90, %c0_91], %103 {strides = array<i32>} : memref<72x512xf32, #tpu.memory_space<vmem>>, vector<8x512xf32>,
    %c0_92 = arith.constant 0 : index
    %c129_93 = arith.constant 129 : index
    %105 = vector.load %arg12[%c0_92, %c129_93] : memref<8x768xf32, #tpu.memory_space<vmem>>, vector<8x512xf32>
    %c5_94 = arith.constant 5 : index
    %c0_95 = arith.constant 0 : index
    %106 = vector.load %arg4[%c5_94, %c0_95] : memref<9x512xf32, #tpu.memory_space<vmem>>, vector<1x512xf32>
    %107 = vector.broadcast %106 : vector<1x512xf32> to vector<8x512xf32>
    %108 = arith.mulf %105, %107 : vector<8x512xf32>
    %c40_96 = arith.constant 40 : index
    %c0_97 = arith.constant 0 : index
    %109 = vector.load %arg13[%c40_96, %c0_97] : memref<72x512xf32, #tpu.memory_space<vmem>>, vector<8x512xf32>
    tpu.vector_store %arg13[%c40_96, %c0_97], %108 {strides = array<i32>} : memref<72x512xf32, #tpu.memory_space<vmem>>, vector<8x512xf32>,
    %c0_98 = arith.constant 0 : index
    %c143_99 = arith.constant 143 : index
    %110 = vector.load %arg12[%c0_98, %c143_99] : memref<8x768xf32, #tpu.memory_space<vmem>>, vector<8x512xf32>
    %c6_100 = arith.constant 6 : index
    %c0_101 = arith.constant 0 : index
    %111 = vector.load %arg4[%c6_100, %c0_101] : memref<9x512xf32, #tpu.memory_space<vmem>>, vector<1x512xf32>
    %112 = vector.broadcast %111 : vector<1x512xf32> to vector<8x512xf32>
    %113 = arith.mulf %110, %112 : vector<8x512xf32>
    %c48_102 = arith.constant 48 : index
    %c0_103 = arith.constant 0 : index
    %114 = vector.load %arg13[%c48_102, %c0_103] : memref<72x512xf32, #tpu.memory_space<vmem>>, vector<8x512xf32>
    tpu.vector_store %arg13[%c48_102, %c0_103], %113 {strides = array<i32>} : memref<72x512xf32, #tpu.memory_space<vmem>>, vector<8x512xf32>,
    %c0_104 = arith.constant 0 : index
    %c144_105 = arith.constant 144 : index
    %115 = vector.load %arg12[%c0_104, %c144_105] : memref<8x768xf32, #tpu.memory_space<vmem>>, vector<8x512xf32>
    %c7_106 = arith.constant 7 : index
    %c0_107 = arith.constant 0 : index
    %116 = vector.load %arg4[%c7_106, %c0_107] : memref<9x512xf32, #tpu.memory_space<vmem>>, vector<1x512xf32>
    %117 = vector.broadcast %116 : vector<1x512xf32> to vector<8x512xf32>
    %118 = arith.mulf %115, %117 : vector<8x512xf32>
    %c56_108 = arith.constant 56 : index
    %c0_109 = arith.constant 0 : index
    %119 = vector.load %arg13[%c56_108, %c0_109] : memref<72x512xf32, #tpu.memory_space<vmem>>, vector<8x512xf32>
    tpu.vector_store %arg13[%c56_108, %c0_109], %118 {strides = array<i32>} : memref<72x512xf32, #tpu.memory_space<vmem>>, vector<8x512xf32>,
    %c0_110 = arith.constant 0 : index
    %c145_111 = arith.constant 145 : index
    %120 = vector.load %arg12[%c0_110, %c145_111] : memref<8x768xf32, #tpu.memory_space<vmem>>, vector<8x512xf32>
    %c8_112 = arith.constant 8 : index
    %c0_113 = arith.constant 0 : index
    %121 = vector.load %arg4[%c8_112, %c0_113] : memref<9x512xf32, #tpu.memory_space<vmem>>, vector<1x512xf32>
    %122 = vector.broadcast %121 : vector<1x512xf32> to vector<8x512xf32>
    %123 = arith.mulf %120, %122 : vector<8x512xf32>
    %c64_114 = arith.constant 64 : index
    %c0_115 = arith.constant 0 : index
    %124 = vector.load %arg13[%c64_114, %c0_115] : memref<72x512xf32, #tpu.memory_space<vmem>>, vector<8x512xf32>
    tpu.vector_store %arg13[%c64_114, %c0_115], %123 {strides = array<i32>} : memref<72x512xf32, #tpu.memory_space<vmem>>, vector<8x512xf32>,
    %c0_116 = arith.constant 0 : index
    %c0_117 = arith.constant 0 : index
    %125 = vector.load %arg13[%c0_116, %c0_117] : memref<72x512xf32, #tpu.memory_space<vmem>>, vector<72x512xf32>
    %cst_118 = arith.constant dense<0.000000e+00> : vector<4x512xf32>
    %126 = tpu.matmul %80, %125, %cst_118 {dimension_numbers = #tpu.dot_dimension_numbers<[1], [0], [0], [1], [0, 0, 1, 1], [], []>} : vector<4x72xf32>, vector<72x512xf32>, vector<4x512xf32> -> vector<4x512xf32>
    %cst_119 = arith.constant dense<0.000000e+00> : vector<4xf32>
    %127 = vector.multi_reduction <add>, %126, %cst_119 [1] : vector<4x512xf32> to vector<4xf32>
    %128 = vector.shape_cast %127 : vector<4xf32> to vector<4x1xf32>
    %cst_120 = arith.constant 0.001953125 : f32
    %129 = vector.broadcast %cst_120 : f32 to vector<4x1xf32>
    %130 = arith.mulf %128, %129 : vector<4x1xf32>
    %131 = vector.broadcast %130 : vector<4x1xf32> to vector<4x512xf32>
    %132 = arith.subf %126, %131 : vector<4x512xf32>
    %133 = arith.mulf %132, %132 : vector<4x512xf32>
    %cst_121 = arith.constant dense<0.000000e+00> : vector<4xf32>
    %134 = vector.multi_reduction <add>, %133, %cst_121 [1] : vector<4x512xf32> to vector<4xf32>
    %135 = vector.shape_cast %134 : vector<4xf32> to vector<4x1xf32>
    %cst_122 = arith.constant 0.001953125 : f32
    %136 = vector.broadcast %cst_122 : f32 to vector<4x1xf32>
    %137 = arith.mulf %135, %136 : vector<4x1xf32>
    %cst_123 = arith.constant 9.99999974E-6 : f32
    %138 = vector.broadcast %cst_123 : f32 to vector<4x1xf32>
    %139 = arith.addf %137, %138 : vector<4x1xf32>
    %140 = math.rsqrt %139 : vector<4x1xf32>
    %141 = arith.mulf %140, %81 : vector<4x1xf32>
    %142 = vector.broadcast %141 : vector<4x1xf32> to vector<4x512xf32>
    %143 = arith.mulf %132, %142 : vector<4x512xf32>
    %144 = vector.broadcast %82 : vector<4x1xf32> to vector<4x512xf32>
    %145 = arith.addf %143, %144 : vector<4x512xf32>
    %cst_124 = arith.constant 0.000000e+00 : f32
    %146 = vector.broadcast %cst_124 : f32 to vector<4x512xf32>
    %147 = arith.maximumf %145, %146 : vector<4x512xf32>
    %c0_125 = arith.constant 0 : index
    %c0_126 = arith.constant 0 : index
    %148 = vector.load %arg11[%c0_125, %c0_126] : memref<4x512xf32, #tpu.memory_space<vmem>>, vector<4x512xf32>
    tpu.vector_store %arg11[%c0_125, %c0_126], %147 {strides = array<i32>} : memref<4x512xf32, #tpu.memory_space<vmem>>, vector<4x512xf32>,
    return
  }
  func.func @transform_0(%arg0: i32) -> (i32, i32) {
    %c0_i32 = arith.constant 0 : i32
    %c0_i32_0 = arith.constant 0 : i32
    %c0_i32_1 = arith.constant 0 : i32
    return %c0_i32, %c0_i32_0 : i32, i32
  }
  func.func @transform_1(%arg0: i32) -> (i32, i32) {
    %c0_i32 = arith.constant 0 : i32
    %c0_i32_0 = arith.constant 0 : i32
    %c0_i32_1 = arith.constant 0 : i32
    return %c0_i32, %c0_i32_0 : i32, i32
  }
  func.func @transform_2(%arg0: i32) -> (i32, i32) {
    %c0_i32 = arith.constant 0 : i32
    %c0_i32_0 = arith.constant 0 : i32
    %c0_i32_1 = arith.constant 0 : i32
    return %c0_i32, %c0_i32_0 : i32, i32
  }
  func.func @transform_3(%arg0: i32) -> (i32, i32) {
    %c0_i32 = arith.constant 0 : i32
    %c0_i32_0 = arith.constant 0 : i32
    %c0_i32_1 = arith.constant 0 : i32
    return %c0_i32, %c0_i32_0 : i32, i32
  }
  func.func @transform_4(%arg0: i32) -> (i32, i32) {
    %c0_i32 = arith.constant 0 : i32
    %c0_i32_0 = arith.constant 0 : i32
    %c0_i32_1 = arith.constant 0 : i32
    return %c0_i32, %c0_i32_0 : i32, i32
  }
  func.func @transform_5(%arg0: i32) -> (i32, i32) {
    %c0_i32 = arith.constant 0 : i32
    %c0_i32_0 = arith.constant 0 : i32
    %c0_i32_1 = arith.constant 0 : i32
    return %c0_i32, %c0_i32_0 : i32, i32
  }
  func.func @transform_6(%arg0: i32) -> (i32, i32) {
    %c0_i32 = arith.constant 0 : i32
    %c0_i32_0 = arith.constant 0 : i32
    %c0_i32_1 = arith.constant 0 : i32
    return %c0_i32, %c0_i32_0 : i32, i32
  }
  func.func @transform_7(%arg0: i32) -> (i32, i32) {
    %c0_i32 = arith.constant 0 : i32
    %c0_i32_0 = arith.constant 0 : i32
    %c0_i32_1 = arith.constant 0 : i32
    return %c0_i32, %c0_i32_0 : i32, i32
  }
  func.func @transform_8(%arg0: i32) -> (i32, i32) {
    %c0_i32 = arith.constant 0 : i32
    %c0_i32_0 = arith.constant 0 : i32
    %c0_i32_1 = arith.constant 0 : i32
    return %c0_i32, %c0_i32_0 : i32, i32
  }
  func.func @transform_9(%arg0: i32) -> (i32, i32) {
    %c0_i32 = arith.constant 0 : i32
    %c0_i32_0 = arith.constant 0 : i32
    %c0_i32_1 = arith.constant 0 : i32
    return %c0_i32, %c0_i32_0 : i32, i32
  }
  func.func @transform_10(%arg0: i32) -> (i32, i32) {
    %c0_i32 = arith.constant 0 : i32
    %c0_i32_0 = arith.constant 0 : i32
    %c0_i32_1 = arith.constant 0 : i32
    return %c0_i32, %c0_i32_0 : i32, i32
  }
}

</mosaic_0001>

<llo_original>
// kernel: up_forward.1
$region0: #{up_forward.1}
  #allocation0 [shape = 'u32[]', space=smem, size = 0x4, offset = 0x4, fixed_abs, tag = 'smem constant byte address 0x4 - core index']
  #allocation1 [shape = 'u32[144,128]{1,0:T(1,128)}', space=vmem, size = 0x12000, scoped, tag = 'internal scratch']
  #allocation2 [shape = 'f32[8,768]{1,0:T(8,128)}', space=vmem, size = 0x6000, scoped, tag = 'scratch operand']
  #allocation3 [shape = 'f32[72,512]{1,0:T(8,128)}', space=vmem, size = 0x24000, scoped, tag = 'scratch operand']
  %s0 = inlined_call_operand.vmem [shape: f32[8,64], index: 0, kind: input, shape index: {}]
  %s1 = inlined_call_operand.vmem [shape: f32[4,512], index: 1, kind: input, shape index: {}]
  %s2 = inlined_call_operand.vmem [shape: f32[64,256], index: 2, kind: input, shape index: {}]
  %s3 = inlined_call_operand.vmem [shape: f32[9,512], index: 3, kind: input, shape index: {}]
  %s4 = inlined_call_operand.vmem [shape: f32[4,72], index: 4, kind: input, shape index: {}]
  %s5 = inlined_call_operand.vmem [shape: f32[4,1], index: 5, kind: input, shape index: {}]
  %s6 = inlined_call_operand.vmem [shape: f32[4,1], index: 6, kind: input, shape index: {}]
  %s7 = inlined_call_operand.vmem [shape: f32[4,72], index: 7, kind: input, shape index: {}]
  %s8 = inlined_call_operand.vmem [shape: f32[4,1], index: 8, kind: input, shape index: {}]
  %s9 = inlined_call_operand.vmem [shape: f32[4,1], index: 9, kind: input, shape index: {}]
  %s10 = inlined_call_operand.vmem [shape: f32[4,512], index: 10, kind: output, shape index: {}]
  %s11 = sld [smem:[#allocation0]]
  $region50: #{up_forward.1} parent=0
    _
  %s13 = ssub.s32 1, %s11
  %s14 = scalar_select 0, %s13, %s11
  // Predicated region
  $region2: #{up_forward.1} parent=0 // pred_check
    _
  $region3: #{up_forward.1} parent=0 // pred_check_branch
    %16 = sbr.rel (0) target = $region5
  $region4: #{up_forward.1} parent=0 // pred_region
    _
  $region5: #{up_forward.1} parent=0 // pred_fallthru
    _
  // Predicated region
  $region6: #{up_forward.1} parent=0 // pred_check
    _
  $region7: #{up_forward.1} parent=0 // pred_check_branch
    %18 = sbr.rel (0) target = $region9
  $region8: #{up_forward.1} parent=0 // pred_region
    _
  $region9: #{up_forward.1} parent=0 // pred_fallthru
    _
  // Predicated region
  $region10: #{up_forward.1} parent=0 // pred_check
    _
  $region11: #{up_forward.1} parent=0 // pred_check_branch
    %20 = sbr.rel (0) target = $region13
  $region12: #{up_forward.1} parent=0 // pred_region
    _
  $region13: #{up_forward.1} parent=0 // pred_fallthru
    _
  // Predicated region
  $region14: #{up_forward.1} parent=0 // pred_check
    _
  $region15: #{up_forward.1} parent=0 // pred_check_branch
    %22 = sbr.rel (0) target = $region17
  $region16: #{up_forward.1} parent=0 // pred_region
    _
  $region17: #{up_forward.1} parent=0 // pred_fallthru
    _
  // Predicated region
  $region18: #{up_forward.1} parent=0 // pred_check
    _
  $region19: #{up_forward.1} parent=0 // pred_check_branch
    %24 = sbr.rel (0) target = $region21
  $region20: #{up_forward.1} parent=0 // pred_region
    _
  $region21: #{up_forward.1} parent=0 // pred_fallthru
    _
  // Predicated region
  $region22: #{up_forward.1} parent=0 // pred_check
    _
  $region23: #{up_forward.1} parent=0 // pred_check_branch
    %26 = sbr.rel (0) target = $region25
  $region24: #{up_forward.1} parent=0 // pred_region
    _
  $region25: #{up_forward.1} parent=0 // pred_fallthru
    _
  // Predicated region
  $region26: #{up_forward.1} parent=0 // pred_check
    _
  $region27: #{up_forward.1} parent=0 // pred_check_branch
    %28 = sbr.rel (0) target = $region29
  $region28: #{up_forward.1} parent=0 // pred_region
    _
  $region29: #{up_forward.1} parent=0 // pred_fallthru
    _
  // Predicated region
  $region30: #{up_forward.1} parent=0 // pred_check
    _
  $region31: #{up_forward.1} parent=0 // pred_check_branch
    %30 = sbr.rel (0) target = $region33
  $region32: #{up_forward.1} parent=0 // pred_region
    _
  $region33: #{up_forward.1} parent=0 // pred_fallthru
    _
  // Predicated region
  $region34: #{up_forward.1} parent=0 // pred_check
    _
  $region35: #{up_forward.1} parent=0 // pred_check_branch
    %32 = sbr.rel (0) target = $region37
  $region36: #{up_forward.1} parent=0 // pred_region
    _
  $region37: #{up_forward.1} parent=0 // pred_fallthru
    _
  // Predicated region
  $region38: #{up_forward.1} parent=0 // pred_check
    _
  $region39: #{up_forward.1} parent=0 // pred_check_branch
    %34 = sbr.rel (0) target = $region41
  $region40: #{up_forward.1} parent=0 // pred_region
    _
  $region41: #{up_forward.1} parent=0 // pred_fallthru
    _
  %35 = vst [vmem:[#allocation2] sm:$0xff] 0.0
  %36 = vst [vmem:[#allocation2 + $0x8] sm:$0xff] 0.0
  %37 = vst [vmem:[#allocation2 + $0x10] sm:$0xff] 0.0
  %38 = vst [vmem:[#allocation2 + $0x18] sm:$0xff] 0.0
  %39 = vst [vmem:[#allocation2 + $0x20] sm:$0xff] 0.0
  %40 = vst [vmem:[#allocation2 + $0x28] sm:$0xff] 0.0
  %v41 = vld [vmem:[%s1] sm:$0xff]
  %v42 = vld [vmem:[%s1 + $0x8] sm:$0xff]
  %v45 = vcombine.high %v41, %v41
  %v46 = vcombine.high %v42, %v42
  %49 = vst [vmem:[#allocation2 + $0x8] sm:$0xf] %v41
  %50 = vst [vmem:[#allocation2 + $0x10] sm:$0xf] %v45
  %51 = vst [vmem:[#allocation2 + $0x18] sm:$0xf] %v42
  %52 = vst [vmem:[#allocation2 + $0x20] sm:$0xf] %v46
  %v53 = vld [vmem:[%s0] sm:$0xff]
  %v54 = vld [vmem:[%s2] sm:$0xff]
  %v55 = vld [vmem:[%s2 + $0x8] sm:$0xff]
  %v56 = vld [vmem:[%s2 + $0x10] sm:$0xff]
  %v57 = vld [vmem:[%s2 + $0x18] sm:$0xff]
  %v58 = vld [vmem:[%s2 + $0x20] sm:$0xff]
  %v59 = vld [vmem:[%s2 + $0x28] sm:$0xff]
  %v60 = vld [vmem:[%s2 + $0x30] sm:$0xff]
  %v61 = vld [vmem:[%s2 + $0x38] sm:$0xff]
  %v62 = vld [vmem:[%s2 + $0x40] sm:$0xff]
  %v63 = vld [vmem:[%s2 + $0x48] sm:$0xff]
  %v64 = vld [vmem:[%s2 + $0x50] sm:$0xff]
  %v65 = vld [vmem:[%s2 + $0x58] sm:$0xff]
  %v66 = vld [vmem:[%s2 + $0x60] sm:$0xff]
  %v67 = vld [vmem:[%s2 + $0x68] sm:$0xff]
  %v68 = vld [vmem:[%s2 + $0x70] sm:$0xff]
  %v69 = vld [vmem:[%s2 + $0x78] sm:$0xff]
  %vm70 = vcmask 523264
  %v72 = vsel %vm70, %v53, 0
  %74 = vmatprep.subr.mxu0 %v55
  %75 = vmatpush1.msra.mxu0 %v54
  %76 = vmatprep.subr.mxu0 %v57
  %77 = vmatpush1.msra.mxu0 %v56
  %78 = vmatprep.subr.mxu0 %v59
  %79 = vmatpush1.msra.mxu0 %v58
  %80 = vmatprep.subr.mxu0 %v61
  %81 = vmatpush1.msra.mxu0 %v60
  %82 = vmatprep.subr.mxu0 %v63
  %83 = vmatpush1.msra.mxu0 %v62
  %84 = vmatprep.subr.mxu0 %v65
  %85 = vmatpush1.msra.mxu0 %v64
  %86 = vmatprep.subr.mxu0 %v67
  %87 = vmatpush1.msra.mxu0 %v66
  %88 = vmatprep.subr.mxu0 %v69
  %89 = vmatpush1.msra.mxu0 %v68
  %90 = vmatprep.subr.mxu0 0.0
  %91 = vmatpush1.msra.mxu0 0.0
  %92 = vmatprep.subr.mxu0 0.0
  %93 = vmatpush1.msra.mxu0 0.0
  %94 = vmatprep.subr.mxu0 0.0
  %95 = vmatpush1.msra.mxu0 0.0
  %96 = vmatprep.subr.mxu0 0.0
  %97 = vmatpush1.msra.mxu0 0.0
  %98 = vmatprep.subr.mxu0 0.0
  %99 = vmatpush1.msra.mxu0 0.0
  %100 = vmatprep.subr.mxu0 0.0
  %101 = vmatpush1.msra.mxu0 0.0
  %102 = vmatprep.subr.mxu0 0.0
  %103 = vmatpush1.msra.mxu0 0.0
  %104 = vmatprep.subr.mxu0 0.0
  %105 = vmatpush1.msra.mxu0 0.0
  %106 = vmatprep.subr.mxu0 0.0
  %107 = vmatpush1.msra.mxu0 0.0
  %108 = vmatprep.subr.mxu0 0.0
  %109 = vmatpush1.msra.mxu0 0.0
  %110 = vmatprep.subr.mxu0 0.0
  %111 = vmatpush1.msra.mxu0 0.0
  %112 = vmatprep.subr.mxu0 0.0
  %113 = vmatpush1.msra.mxu0 0.0
  %114 = vmatprep.subr.mxu0 0.0
  %115 = vmatpush1.msra.mxu0 0.0
  %116 = vmatprep.subr.mxu0 0.0
  %117 = vmatpush1.msra.mxu0 0.0
  %118 = vmatprep.subr.mxu0 0.0
  %119 = vmatpush1.msra.mxu0 0.0
  %120 = vmatprep.subr.mxu0 0.0
  %121 = vmatpush1.msra.mxu0 0.0
  %122 = vmatprep.subr.mxu0 0.0
  %123 = vmatpush1.msra.mxu0 0.0
  %124 = vmatprep.subr.mxu0 0.0
  %125 = vmatpush1.msra.mxu0 0.0
  %126 = vmatprep.subr.mxu0 0.0
  %127 = vmatpush1.msra.mxu0 0.0
  %128 = vmatprep.subr.mxu0 0.0
  %129 = vmatpush1.msra.mxu0 0.0
  %130 = vmatprep.subr.mxu0 0.0
  %131 = vmatpush1.msra.mxu0 0.0
  %132 = vmatprep.subr.mxu0 0.0
  %133 = vmatpush1.msra.mxu0 0.0
  %134 = vmatprep.subr.mxu0 0.0
  %135 = vmatpush1.msra.mxu0 0.0
  %136 = vmatprep.subr.mxu0 0.0
  %137 = vmatpush1.msra.mxu0 0.0
  %138 = vmatprep.mubr.f32.mxu0 0.0
  %139 = vmatmul.mubr.f32.gmra.mrb[0].mxu0 %v72
  %v140 = vpop.f32.mrb[0].mxu0
  %v141 = vadd.f32 0.0, %v140
  %v142 = vpop.f32.mrb[0].mxu0
  %v143 = vadd.f32 0.0, %v142
  %144 = vdwg.mxu0
  %v147 = vrot.slane %v141, 4
  %v148 = vrot.slane %v143, 4
  %151 = vst [vmem:[#allocation2 + $0x8] sm:$0xf0] %v147
  %152 = vst [vmem:[#allocation2 + $0x10] sm:$0xf0] %v148
  %153 = vst [vmem:[#allocation2 + $0x18] sm:$0xf0] %v141
  %154 = vst [vmem:[#allocation2 + $0x20] sm:$0xf0] %v143
  %v155 = vld [vmem:[%s4] sm:$0xf]
  %v156 = vld [vmem:[%s5] sm:$0xf]
  %v157 = vld [vmem:[%s6] sm:$0xf]
  %v158 = vld [vmem:[#allocation2] sm:$0xff]
  %v159 = vld [vmem:[#allocation2 + $0x8] sm:$0xff]
  %v160 = vld [vmem:[#allocation2 + $0x10] sm:$0xff]
  %v161 = vld [vmem:[#allocation2 + $0x18] sm:$0xff]
  %v162 = vld [vmem:[#allocation2 + $0x20] sm:$0xff]
  %v163 = vld [vmem:[%s3] ss:$8 sm:$0xf]
  %v165 = vlaneseq
  %v166 = vshrl.u32 %v165, 7
  %v167 = vsub.s32 0, %v166
  %v168 = vrot.slane %v163, %v167
  %v169 = vlaneseq
  %v170 = vshrl.u32 %v169, 7
  %v171 = vsub.s32 1, %v170
  %v172 = vrot.slane %v163, %v171
  %v173 = vlaneseq
  %v174 = vshrl.u32 %v173, 7
  %v175 = vsub.s32 2, %v174
  %v176 = vrot.slane %v163, %v175
  %v177 = vlaneseq
  %v178 = vshrl.u32 %v177, 7
  %v179 = vsub.s32 3, %v178
  %v180 = vrot.slane %v163, %v179
  %181 = vrot.lane.b32.xlu0 %v168, 111
  %v182 = vpop.permute.xlu0 %181
  %183 = vrot.lane.b32.xlu0 %v172, 111
  %v184 = vpop.permute.xlu0 %183
  %185 = vrot.lane.b32.xlu0 %v176, 111
  %v186 = vpop.permute.xlu0 %185
  %187 = vrot.lane.b32.xlu0 %v180, 111
  %v188 = vpop.permute.xlu0 %187
  %vm189 = vcmask 908288
  %v190 = vsel %vm189, %v182, %v184
  %v191 = vsel %vm189, %v184, %v186
  %v192 = vsel %vm189, %v186, %v188
  %v198 = vmul.f32 %v158, %v182
  %v199 = vmul.f32 %v159, %v190
  %v200 = vmul.f32 %v160, %v191
  %v201 = vmul.f32 %v161, %v192
  %v202 = vmul.f32 %v162, %v188
  %208 = vrot.lane.b32.xlu0 %v198, 17
  %v209 = vpop.permute.xlu0 %208
  %210 = vrot.lane.b32.xlu0 %v199, 17
  %v211 = vpop.permute.xlu0 %210
  %212 = vrot.lane.b32.xlu0 %v200, 17
  %v213 = vpop.permute.xlu0 %212
  %214 = vrot.lane.b32.xlu0 %v201, 17
  %v215 = vpop.permute.xlu0 %214
  %216 = vrot.lane.b32.xlu0 %v202, 17
  %v217 = vpop.permute.xlu0 %216
  %vm218 = vcmask 138240
  %v219 = vsel %vm218, %v209, %v211
  %v220 = vsel %vm218, %v211, %v213
  %v221 = vsel %vm218, %v213, %v215
  %v222 = vsel %vm218, %v215, %v217
  %227 = vst [vmem:[#allocation3] sm:$0xff] %v219
  %228 = vst [vmem:[#allocation3 + $0x8] sm:$0xff] %v220
  %229 = vst [vmem:[#allocation3 + $0x10] sm:$0xff] %v221
  %230 = vst [vmem:[#allocation3 + $0x18] sm:$0xff] %v222
  %v231 = vld [vmem:[#allocation2] sm:$0xff]
  %v232 = vld [vmem:[#allocation2 + $0x8] sm:$0xff]
  %v233 = vld [vmem:[#allocation2 + $0x10] sm:$0xff]
  %v234 = vld [vmem:[#allocation2 + $0x18] sm:$0xff]
  %v235 = vld [vmem:[#allocation2 + $0x20] sm:$0xff]
  %s236 = scalar_lea.vmem %s3, 1
  %v237 = vld [vmem:[%s236] ss:$8 sm:$0xf]
  %v239 = vlaneseq
  %v240 = vshrl.u32 %v239, 7
  %v241 = vsub.s32 0, %v240
  %v242 = vrot.slane %v237, %v241
  %v243 = vlaneseq
  %v244 = vshrl.u32 %v243, 7
  %v245 = vsub.s32 1, %v244
  %v246 = vrot.slane %v237, %v245
  %v247 = vlaneseq
  %v248 = vshrl.u32 %v247, 7
  %v249 = vsub.s32 2, %v248
  %v250 = vrot.slane %v237, %v249
  %v251 = vlaneseq
  %v252 = vshrl.u32 %v251, 7
  %v253 = vsub.s32 3, %v252
  %v254 = vrot.slane %v237, %v253
  %255 = vrot.lane.b32.xlu0 %v242, 112
  %v256 = vpop.permute.xlu0 %255
  %257 = vrot.lane.b32.xlu0 %v246, 112
  %v258 = vpop.permute.xlu0 %257
  %259 = vrot.lane.b32.xlu0 %v250, 112
  %v260 = vpop.permute.xlu0 %259
  %261 = vrot.lane.b32.xlu0 %v254, 112
  %v262 = vpop.permute.xlu0 %261
  %vm263 = vcmask 916480
  %v264 = vsel %vm263, %v256, %v258
  %v265 = vsel %vm263, %v258, %v260
  %v266 = vsel %vm263, %v260, %v262
  %v272 = vmul.f32 %v231, %v256
  %v273 = vmul.f32 %v232, %v264
  %v274 = vmul.f32 %v233, %v265
  %v275 = vmul.f32 %v234, %v266
  %v276 = vmul.f32 %v235, %v262
  %282 = vrot.lane.b32.xlu0 %v272, 16
  %v283 = vpop.permute.xlu0 %282
  %284 = vrot.lane.b32.xlu0 %v273, 16
  %v285 = vpop.permute.xlu0 %284
  %286 = vrot.lane.b32.xlu0 %v274, 16
  %v287 = vpop.permute.xlu0 %286
  %288 = vrot.lane.b32.xlu0 %v275, 16
  %v289 = vpop.permute.xlu0 %288
  %290 = vrot.lane.b32.xlu0 %v276, 16
  %v291 = vpop.permute.xlu0 %290
  %vm292 = vcmask 130048
  %v293 = vsel %vm292, %v283, %v285
  %v294 = vsel %vm292, %v285, %v287
  %v295 = vsel %vm292, %v287, %v289
  %v296 = vsel %vm292, %v289, %v291
  %301 = vst [vmem:[#allocation3 + $0x20] sm:$0xff] %v293
  %302 = vst [vmem:[#allocation3 + $0x28] sm:$0xff] %v294
  %303 = vst [vmem:[#allocation3 + $0x30] sm:$0xff] %v295
  %304 = vst [vmem:[#allocation3 + $0x38] sm:$0xff] %v296
  %v305 = vld [vmem:[#allocation2] sm:$0xff]
  %v306 = vld [vmem:[#allocation2 + $0x8] sm:$0xff]
  %v307 = vld [vmem:[#allocation2 + $0x10] sm:$0xff]
  %v308 = vld [vmem:[#allocation2 + $0x18] sm:$0xff]
  %v309 = vld [vmem:[#allocation2 + $0x20] sm:$0xff]
  %s310 = scalar_lea.vmem %s3, 2
  %v311 = vld [vmem:[%s310] ss:$8 sm:$0xf]
  %v313 = vlaneseq
  %v314 = vshrl.u32 %v313, 7
  %v315 = vsub.s32 0, %v314
  %v316 = vrot.slane %v311, %v315
  %v317 = vlaneseq
  %v318 = vshrl.u32 %v317, 7
  %v319 = vsub.s32 1, %v318
  %v320 = vrot.slane %v311, %v319
  %v321 = vlaneseq
  %v322 = vshrl.u32 %v321, 7
  %v323 = vsub.s32 2, %v322
  %v324 = vrot.slane %v311, %v323
  %v325 = vlaneseq
  %v326 = vshrl.u32 %v325, 7
  %v327 = vsub.s32 3, %v326
  %v328 = vrot.slane %v311, %v327
  %329 = vrot.lane.b32.xlu0 %v316, 113
  %v330 = vpop.permute.xlu0 %329
  %331 = vrot.lane.b32.xlu0 %v320, 113
  %v332 = vpop.permute.xlu0 %331
  %333 = vrot.lane.b32.xlu0 %v324, 113
  %v334 = vpop.permute.xlu0 %333
  %335 = vrot.lane.b32.xlu0 %v328, 113
  %v336 = vpop.permute.xlu0 %335
  %vm337 = vcmask 924672
  %v338 = vsel %vm337, %v330, %v332
  %v339 = vsel %vm337, %v332, %v334
  %v340 = vsel %vm337, %v334, %v336
  %v346 = vmul.f32 %v305, %v330
  %v347 = vmul.f32 %v306, %v338
  %v348 = vmul.f32 %v307, %v339
  %v349 = vmul.f32 %v308, %v340
  %v350 = vmul.f32 %v309, %v336
  %356 = vrot.lane.b32.xlu0 %v346, 15
  %v357 = vpop.permute.xlu0 %356
  %358 = vrot.lane.b32.xlu0 %v347, 15
  %v359 = vpop.permute.xlu0 %358
  %360 = vrot.lane.b32.xlu0 %v348, 15
  %v361 = vpop.permute.xlu0 %360
  %362 = vrot.lane.b32.xlu0 %v349, 15
  %v363 = vpop.permute.xlu0 %362
  %364 = vrot.lane.b32.xlu0 %v350, 15
  %v365 = vpop.permute.xlu0 %364
  %vm366 = vcmask 121856
  %v367 = vsel %vm366, %v357, %v359
  %v368 = vsel %vm366, %v359, %v361
  %v369 = vsel %vm366, %v361, %v363
  %v370 = vsel %vm366, %v363, %v365
  %375 = vst [vmem:[#allocation3 + $0x40] sm:$0xff] %v367
  %376 = vst [vmem:[#allocation3 + $0x48] sm:$0xff] %v368
  %377 = vst [vmem:[#allocation3 + $0x50] sm:$0xff] %v369
  %378 = vst [vmem:[#allocation3 + $0x58] sm:$0xff] %v370
  %v379 = vld [vmem:[#allocation2] sm:$0xff]
  %v380 = vld [vmem:[#allocation2 + $0x8] sm:$0xff]
  %v381 = vld [vmem:[#allocation2 + $0x10] sm:$0xff]
  %v382 = vld [vmem:[#allocation2 + $0x18] sm:$0xff]
  %v383 = vld [vmem:[#allocation2 + $0x20] sm:$0xff]
  %s384 = scalar_lea.vmem %s3, 3
  %v385 = vld [vmem:[%s384] ss:$8 sm:$0xf]
  %v387 = vlaneseq
  %v388 = vshrl.u32 %v387, 7
  %v389 = vsub.s32 0, %v388
  %v390 = vrot.slane %v385, %v389
  %v391 = vlaneseq
  %v392 = vshrl.u32 %v391, 7
  %v393 = vsub.s32 1, %v392
  %v394 = vrot.slane %v385, %v393
  %v395 = vlaneseq
  %v396 = vshrl.u32 %v395, 7
  %v397 = vsub.s32 2, %v396
  %v398 = vrot.slane %v385, %v397
  %v399 = vlaneseq
  %v400 = vshrl.u32 %v399, 7
  %v401 = vsub.s32 3, %v400
  %v402 = vrot.slane %v385, %v401
  %403 = vrot.lane.b32.xlu0 %v390, 127
  %v404 = vpop.permute.xlu0 %403
  %405 = vrot.lane.b32.xlu0 %v394, 127
  %v406 = vpop.permute.xlu0 %405
  %407 = vrot.lane.b32.xlu0 %v398, 127
  %v408 = vpop.permute.xlu0 %407
  %409 = vrot.lane.b32.xlu0 %v402, 127
  %v410 = vpop.permute.xlu0 %409
  %vm411 = vcmask 1039360
  %v412 = vsel %vm411, %v404, %v406
  %v413 = vsel %vm411, %v406, %v408
  %v414 = vsel %vm411, %v408, %v410
  %v420 = vmul.f32 %v379, %v404
  %v421 = vmul.f32 %v380, %v412
  %v422 = vmul.f32 %v381, %v413
  %v423 = vmul.f32 %v382, %v414
  %v424 = vmul.f32 %v383, %v410
  %430 = vrot.lane.b32.xlu0 %v420, 1
  %v431 = vpop.permute.xlu0 %430
  %432 = vrot.lane.b32.xlu0 %v421, 1
  %v433 = vpop.permute.xlu0 %432
  %434 = vrot.lane.b32.xlu0 %v422, 1
  %v435 = vpop.permute.xlu0 %434
  %436 = vrot.lane.b32.xlu0 %v423, 1
  %v437 = vpop.permute.xlu0 %436
  %438 = vrot.lane.b32.xlu0 %v424, 1
  %v439 = vpop.permute.xlu0 %438
  %vm440 = vcmask 7168
  %v441 = vsel %vm440, %v431, %v433
  %v442 = vsel %vm440, %v433, %v435
  %v443 = vsel %vm440, %v435, %v437
  %v444 = vsel %vm440, %v437, %v439
  %449 = vst [vmem:[#allocation3 + $0x60] sm:$0xff] %v441
  %450 = vst [vmem:[#allocation3 + $0x68] sm:$0xff] %v442
  %451 = vst [vmem:[#allocation3 + $0x70] sm:$0xff] %v443
  %452 = vst [vmem:[#allocation3 + $0x78] sm:$0xff] %v444
  %v453 = vld [vmem:[#allocation2 + $0x8] sm:$0xff]
  %v454 = vld [vmem:[#allocation2 + $0x10] sm:$0xff]
  %v455 = vld [vmem:[#allocation2 + $0x18] sm:$0xff]
  %v456 = vld [vmem:[#allocation2 + $0x20] sm:$0xff]
  %457 = vst [vmem:[#allocation3 + $0x80] sm:$0xff] %v453
  %458 = vst [vmem:[#allocation3 + $0x88] sm:$0xff] %v454
  %459 = vst [vmem:[#allocation3 + $0x90] sm:$0xff] %v455
  %460 = vst [vmem:[#allocation3 + $0x98] sm:$0xff] %v456
  %v461 = vld [vmem:[#allocation2 + $0x8] sm:$0xff]
  %v462 = vld [vmem:[#allocation2 + $0x10] sm:$0xff]
  %v463 = vld [vmem:[#allocation2 + $0x18] sm:$0xff]
  %v464 = vld [vmem:[#allocation2 + $0x20] sm:$0xff]
  %v465 = vld [vmem:[#allocation2 + $0x28] sm:$0xff]
  %s466 = scalar_lea.vmem %s3, 5
  %v467 = vld [vmem:[%s466] ss:$8 sm:$0xf]
  %v469 = vlaneseq
  %v470 = vshrl.u32 %v469, 7
  %v471 = vsub.s32 0, %v470
  %v472 = vrot.slane %v467, %v471
  %v473 = vlaneseq
  %v474 = vshrl.u32 %v473, 7
  %v475 = vsub.s32 1, %v474
  %v476 = vrot.slane %v467, %v475
  %v477 = vlaneseq
  %v478 = vshrl.u32 %v477, 7
  %v479 = vsub.s32 2, %v478
  %v480 = vrot.slane %v467, %v479
  %v481 = vlaneseq
  %v482 = vshrl.u32 %v481, 7
  %v483 = vsub.s32 3, %v482
  %v484 = vrot.slane %v467, %v483
  %485 = vrot.lane.b32.xlu0 %v472, 1
  %v486 = vpop.permute.xlu0 %485
  %487 = vrot.lane.b32.xlu0 %v476, 1
  %v488 = vpop.permute.xlu0 %487
  %489 = vrot.lane.b32.xlu0 %v480, 1
  %v490 = vpop.permute.xlu0 %489
  %491 = vrot.lane.b32.xlu0 %v484, 1
  %v492 = vpop.permute.xlu0 %491
  %v493 = vsel %vm440, %v486, %v488
  %v494 = vsel %vm440, %v488, %v490
  %v495 = vsel %vm440, %v490, %v492
  %v501 = vmul.f32 %v461, %v486
  %v502 = vmul.f32 %v462, %v493
  %v503 = vmul.f32 %v463, %v494
  %v504 = vmul.f32 %v464, %v495
  %v505 = vmul.f32 %v465, %v492
  %511 = vrot.lane.b32.xlu0 %v501, 127
  %v512 = vpop.permute.xlu0 %511
  %513 = vrot.lane.b32.xlu0 %v502, 127
  %v514 = vpop.permute.xlu0 %513
  %515 = vrot.lane.b32.xlu0 %v503, 127
  %v516 = vpop.permute.xlu0 %515
  %517 = vrot.lane.b32.xlu0 %v504, 127
  %v518 = vpop.permute.xlu0 %517
  %519 = vrot.lane.b32.xlu0 %v505, 127
  %v520 = vpop.permute.xlu0 %519
  %v521 = vsel %vm411, %v512, %v514
  %v522 = vsel %vm411, %v514, %v516
  %v523 = vsel %vm411, %v516, %v518
  %v524 = vsel %vm411, %v518, %v520
  %529 = vst [vmem:[#allocation3 + $0xa0] sm:$0xff] %v521
  %530 = vst [vmem:[#allocation3 + $0xa8] sm:$0xff] %v522
  %531 = vst [vmem:[#allocation3 + $0xb0] sm:$0xff] %v523
  %532 = vst [vmem:[#allocation3 + $0xb8] sm:$0xff] %v524
  %v533 = vld [vmem:[#allocation2 + $0x8] sm:$0xff]
  %v534 = vld [vmem:[#allocation2 + $0x10] sm:$0xff]
  %v535 = vld [vmem:[#allocation2 + $0x18] sm:$0xff]
  %v536 = vld [vmem:[#allocation2 + $0x20] sm:$0xff]
  %v537 = vld [vmem:[#allocation2 + $0x28] sm:$0xff]
  %s538 = scalar_lea.vmem %s3, 6
  %v539 = vld [vmem:[%s538] ss:$8 sm:$0xf]
  %v541 = vlaneseq
  %v542 = vshrl.u32 %v541, 7
  %v543 = vsub.s32 0, %v542
  %v544 = vrot.slane %v539, %v543
  %v545 = vlaneseq
  %v546 = vshrl.u32 %v545, 7
  %v547 = vsub.s32 1, %v546
  %v548 = vrot.slane %v539, %v547
  %v549 = vlaneseq
  %v550 = vshrl.u32 %v549, 7
  %v551 = vsub.s32 2, %v550
  %v552 = vrot.slane %v539, %v551
  %v553 = vlaneseq
  %v554 = vshrl.u32 %v553, 7
  %v555 = vsub.s32 3, %v554
  %v556 = vrot.slane %v539, %v555
  %557 = vrot.lane.b32.xlu0 %v544, 15
  %v558 = vpop.permute.xlu0 %557
  %559 = vrot.lane.b32.xlu0 %v548, 15
  %v560 = vpop.permute.xlu0 %559
  %561 = vrot.lane.b32.xlu0 %v552, 15
  %v562 = vpop.permute.xlu0 %561
  %563 = vrot.lane.b32.xlu0 %v556, 15
  %v564 = vpop.permute.xlu0 %563
  %v565 = vsel %vm366, %v558, %v560
  %v566 = vsel %vm366, %v560, %v562
  %v567 = vsel %vm366, %v562, %v564
  %v573 = vmul.f32 %v533, %v558
  %v574 = vmul.f32 %v534, %v565
  %v575 = vmul.f32 %v535, %v566
  %v576 = vmul.f32 %v536, %v567
  %v577 = vmul.f32 %v537, %v564
  %583 = vrot.lane.b32.xlu0 %v573, 113
  %v584 = vpop.permute.xlu0 %583
  %585 = vrot.lane.b32.xlu0 %v574, 113
  %v586 = vpop.permute.xlu0 %585
  %587 = vrot.lane.b32.xlu0 %v575, 113
  %v588 = vpop.permute.xlu0 %587
  %589 = vrot.lane.b32.xlu0 %v576, 113
  %v590 = vpop.permute.xlu0 %589
  %591 = vrot.lane.b32.xlu0 %v577, 113
  %v592 = vpop.permute.xlu0 %591
  %v593 = vsel %vm337, %v584, %v586
  %v594 = vsel %vm337, %v586, %v588
  %v595 = vsel %vm337, %v588, %v590
  %v596 = vsel %vm337, %v590, %v592
  %601 = vst [vmem:[#allocation3 + $0xc0] sm:$0xff] %v593
  %602 = vst [vmem:[#allocation3 + $0xc8] sm:$0xff] %v594
  %603 = vst [vmem:[#allocation3 + $0xd0] sm:$0xff] %v595
  %604 = vst [vmem:[#allocation3 + $0xd8] sm:$0xff] %v596
  %v605 = vld [vmem:[#allocation2 + $0x8] sm:$0xff]
  %v606 = vld [vmem:[#allocation2 + $0x10] sm:$0xff]
  %v607 = vld [vmem:[#allocation2 + $0x18] sm:$0xff]
  %v608 = vld [vmem:[#allocation2 + $0x20] sm:$0xff]
  %v609 = vld [vmem:[#allocation2 + $0x28] sm:$0xff]
  %s610 = scalar_lea.vmem %s3, 7
  %v611 = vld [vmem:[%s610] ss:$8 sm:$0xf]
  %v613 = vlaneseq
  %v614 = vshrl.u32 %v613, 7
  %v615 = vsub.s32 0, %v614
  %v616 = vrot.slane %v611, %v615
  %v617 = vlaneseq
  %v618 = vshrl.u32 %v617, 7
  %v619 = vsub.s32 1, %v618
  %v620 = vrot.slane %v611, %v619
  %v621 = vlaneseq
  %v622 = vshrl.u32 %v621, 7
  %v623 = vsub.s32 2, %v622
  %v624 = vrot.slane %v611, %v623
  %v625 = vlaneseq
  %v626 = vshrl.u32 %v625, 7
  %v627 = vsub.s32 3, %v626
  %v628 = vrot.slane %v611, %v627
  %629 = vrot.lane.b32.xlu0 %v616, 16
  %v630 = vpop.permute.xlu0 %629
  %631 = vrot.lane.b32.xlu0 %v620, 16
  %v632 = vpop.permute.xlu0 %631
  %633 = vrot.lane.b32.xlu0 %v624, 16
  %v634 = vpop.permute.xlu0 %633
  %635 = vrot.lane.b32.xlu0 %v628, 16
  %v636 = vpop.permute.xlu0 %635
  %v637 = vsel %vm292, %v630, %v632
  %v638 = vsel %vm292, %v632, %v634
  %v639 = vsel %vm292, %v634, %v636
  %v645 = vmul.f32 %v605, %v630
  %v646 = vmul.f32 %v606, %v637
  %v647 = vmul.f32 %v607, %v638
  %v648 = vmul.f32 %v608, %v639
  %v649 = vmul.f32 %v609, %v636
  %655 = vrot.lane.b32.xlu0 %v645, 112
  %v656 = vpop.permute.xlu0 %655
  %657 = vrot.lane.b32.xlu0 %v646, 112
  %v658 = vpop.permute.xlu0 %657
  %659 = vrot.lane.b32.xlu0 %v647, 112
  %v660 = vpop.permute.xlu0 %659
  %661 = vrot.lane.b32.xlu0 %v648, 112
  %v662 = vpop.permute.xlu0 %661
  %663 = vrot.lane.b32.xlu0 %v649, 112
  %v664 = vpop.permute.xlu0 %663
  %v665 = vsel %vm263, %v656, %v658
  %v666 = vsel %vm263, %v658, %v660
  %v667 = vsel %vm263, %v660, %v662
  %v668 = vsel %vm263, %v662, %v664
  %673 = vst [vmem:[#allocation3 + $0xe0] sm:$0xff] %v665
  %674 = vst [vmem:[#allocation3 + $0xe8] sm:$0xff] %v666
  %675 = vst [vmem:[#allocation3 + $0xf0] sm:$0xff] %v667
  %676 = vst [vmem:[#allocation3 + $0xf8] sm:$0xff] %v668
  %v677 = vld [vmem:[#allocation2 + $0x8] sm:$0xff]
  %v678 = vld [vmem:[#allocation2 + $0x10] sm:$0xff]
  %v679 = vld [vmem:[#allocation2 + $0x18] sm:$0xff]
  %v680 = vld [vmem:[#allocation2 + $0x20] sm:$0xff]
  %v681 = vld [vmem:[#allocation2 + $0x28] sm:$0xff]
  %s682 = scalar_lea.vmem %s3, 32
  %v683 = vld [vmem:[%s682] ss:$8 sm:$0xf]
  %v685 = vlaneseq
  %v686 = vshrl.u32 %v685, 7
  %v687 = vsub.s32 0, %v686
  %v688 = vrot.slane %v683, %v687
  %v689 = vlaneseq
  %v690 = vshrl.u32 %v689, 7
  %v691 = vsub.s32 1, %v690
  %v692 = vrot.slane %v683, %v691
  %v693 = vlaneseq
  %v694 = vshrl.u32 %v693, 7
  %v695 = vsub.s32 2, %v694
  %v696 = vrot.slane %v683, %v695
  %v697 = vlaneseq
  %v698 = vshrl.u32 %v697, 7
  %v699 = vsub.s32 3, %v698
  %v700 = vrot.slane %v683, %v699
  %701 = vrot.lane.b32.xlu0 %v688, 17
  %v702 = vpop.permute.xlu0 %701
  %703 = vrot.lane.b32.xlu0 %v692, 17
  %v704 = vpop.permute.xlu0 %703
  %705 = vrot.lane.b32.xlu0 %v696, 17
  %v706 = vpop.permute.xlu0 %705
  %707 = vrot.lane.b32.xlu0 %v700, 17
  %v708 = vpop.permute.xlu0 %707
  %v709 = vsel %vm218, %v702, %v704
  %v710 = vsel %vm218, %v704, %v706
  %v711 = vsel %vm218, %v706, %v708
  %v717 = vmul.f32 %v677, %v702
  %v718 = vmul.f32 %v678, %v709
  %v719 = vmul.f32 %v679, %v710
  %v720 = vmul.f32 %v680, %v711
  %v721 = vmul.f32 %v681, %v708
  %727 = vrot.lane.b32.xlu0 %v717, 111
  %v728 = vpop.permute.xlu0 %727
  %729 = vrot.lane.b32.xlu0 %v718, 111
  %v730 = vpop.permute.xlu0 %729
  %731 = vrot.lane.b32.xlu0 %v719, 111
  %v732 = vpop.permute.xlu0 %731
  %733 = vrot.lane.b32.xlu0 %v720, 111
  %v734 = vpop.permute.xlu0 %733
  %735 = vrot.lane.b32.xlu0 %v721, 111
  %v736 = vpop.permute.xlu0 %735
  %v737 = vsel %vm189, %v728, %v730
  %v738 = vsel %vm189, %v730, %v732
  %v739 = vsel %vm189, %v732, %v734
  %v740 = vsel %vm189, %v734, %v736
  %745 = vst [vmem:[#allocation3 + $0x100] sm:$0xff] %v737
  %746 = vst [vmem:[#allocation3 + $0x108] sm:$0xff] %v738
  %747 = vst [vmem:[#allocation3 + $0x110] sm:$0xff] %v739
  %748 = vst [vmem:[#allocation3 + $0x118] sm:$0xff] %v740
  %v749 = vld [vmem:[#allocation3] sm:$0xff]
  %v750 = vld [vmem:[#allocation3 + $0x8] sm:$0xff]
  %v751 = vld [vmem:[#allocation3 + $0x10] sm:$0xff]
  %v752 = vld [vmem:[#allocation3 + $0x18] sm:$0xff]
  %v753 = vld [vmem:[#allocation3 + $0x20] sm:$0xff]
  %v754 = vld [vmem:[#allocation3 + $0x28] sm:$0xff]
  %v755 = vld [vmem:[#allocation3 + $0x30] sm:$0xff]
  %v756 = vld [vmem:[#allocation3 + $0x38] sm:$0xff]
  %v757 = vld [vmem:[#allocation3 + $0x40] sm:$0xff]
  %v758 = vld [vmem:[#allocation3 + $0x48] sm:$0xff]
  %v759 = vld [vmem:[#allocation3 + $0x50] sm:$0xff]
  %v760 = vld [vmem:[#allocation3 + $0x58] sm:$0xff]
  %v761 = vld [vmem:[#allocation3 + $0x60] sm:$0xff]
  %v762 = vld [vmem:[#allocation3 + $0x68] sm:$0xff]
  %v763 = vld [vmem:[#allocation3 + $0x70] sm:$0xff]
  %v764 = vld [vmem:[#allocation3 + $0x78] sm:$0xff]
  %v765 = vld [vmem:[#allocation3 + $0x80] sm:$0xff]
  %v766 = vld [vmem:[#allocation3 + $0x88] sm:$0xff]
  %v767 = vld [vmem:[#allocation3 + $0x90] sm:$0xff]
  %v768 = vld [vmem:[#allocation3 + $0x98] sm:$0xff]
  %v769 = vld [vmem:[#allocation3 + $0xa0] sm:$0xff]
  %v770 = vld [vmem:[#allocation3 + $0xa8] sm:$0xff]
  %v771 = vld [vmem:[#allocation3 + $0xb0] sm:$0xff]
  %v772 = vld [vmem:[#allocation3 + $0xb8] sm:$0xff]
  %v773 = vld [vmem:[#allocation3 + $0xc0] sm:$0xff]
  %v774 = vld [vmem:[#allocation3 + $0xc8] sm:$0xff]
  %v775 = vld [vmem:[#allocation3 + $0xd0] sm:$0xff]
  %v776 = vld [vmem:[#allocation3 + $0xd8] sm:$0xff]
  %v777 = vld [vmem:[#allocation3 + $0xe0] sm:$0xff]
  %v778 = vld [vmem:[#allocation3 + $0xe8] sm:$0xff]
  %v779 = vld [vmem:[#allocation3 + $0xf0] sm:$0xff]
  %v780 = vld [vmem:[#allocation3 + $0xf8] sm:$0xff]
  %v781 = vld [vmem:[#allocation3 + $0x100] sm:$0xff]
  %v782 = vld [vmem:[#allocation3 + $0x108] sm:$0xff]
  %v783 = vld [vmem:[#allocation3 + $0x110] sm:$0xff]
  %v784 = vld [vmem:[#allocation3 + $0x118] sm:$0xff]
  %vm785 = vcmask 588800
  %v787 = vsel %vm785, %v155, 0
  %789 = vmatprep.subr.mxu0 %v750
  %790 = vmatpush1.msra.mxu0 %v749
  %791 = vmatprep.subr.mxu0 %v754
  %792 = vmatpush1.msra.mxu0 %v753
  %793 = vmatprep.subr.mxu0 %v758
  %794 = vmatpush1.msra.mxu0 %v757
  %795 = vmatprep.subr.mxu0 %v762
  %796 = vmatpush1.msra.mxu0 %v761
  %797 = vmatprep.subr.mxu0 %v766
  %798 = vmatpush1.msra.mxu0 %v765
  %799 = vmatprep.subr.mxu0 %v770
  %800 = vmatpush1.msra.mxu0 %v769
  %801 = vmatprep.subr.mxu0 %v774
  %802 = vmatpush1.msra.mxu0 %v773
  %803 = vmatprep.subr.mxu0 %v778
  %804 = vmatpush1.msra.mxu0 %v777
  %805 = vmatprep.subr.mxu0 %v782
  %806 = vmatpush1.msra.mxu0 %v781
  %807 = vmatprep.subr.mxu0 0.0
  %808 = vmatpush1.msra.mxu0 0.0
  %809 = vmatprep.subr.mxu0 0.0
  %810 = vmatpush1.msra.mxu0 0.0
  %811 = vmatprep.subr.mxu0 0.0
  %812 = vmatpush1.msra.mxu0 0.0
  %813 = vmatprep.subr.mxu0 0.0
  %814 = vmatpush1.msra.mxu0 0.0
  %815 = vmatprep.subr.mxu0 0.0
  %816 = vmatpush1.msra.mxu0 0.0
  %817 = vmatprep.subr.mxu0 0.0
  %818 = vmatpush1.msra.mxu0 0.0
  %819 = vmatprep.subr.mxu0 0.0
  %820 = vmatpush1.msra.mxu0 0.0
  %821 = vmatprep.subr.mxu0 0.0
  %822 = vmatpush1.msra.mxu0 0.0
  %823 = vmatprep.subr.mxu0 0.0
  %824 = vmatpush1.msra.mxu0 0.0
  %825 = vmatprep.subr.mxu0 0.0
  %826 = vmatpush1.msra.mxu0 0.0
  %827 = vmatprep.subr.mxu0 0.0
  %828 = vmatpush1.msra.mxu0 0.0
  %829 = vmatprep.subr.mxu0 0.0
  %830 = vmatpush1.msra.mxu0 0.0
  %831 = vmatprep.subr.mxu0 0.0
  %832 = vmatpush1.msra.mxu0 0.0
  %833 = vmatprep.subr.mxu0 0.0
  %834 = vmatpush1.msra.mxu0 0.0
  %835 = vmatprep.subr.mxu0 0.0
  %836 = vmatpush1.msra.mxu0 0.0
  %837 = vmatprep.subr.mxu0 0.0
  %838 = vmatpush1.msra.mxu0 0.0
  %839 = vmatprep.subr.mxu0 0.0
  %840 = vmatpush1.msra.mxu0 0.0
  %841 = vmatprep.subr.mxu0 0.0
  %842 = vmatpush1.msra.mxu0 0.0
  %843 = vmatprep.subr.mxu0 0.0
  %844 = vmatpush1.msra.mxu0 0.0
  %845 = vmatprep.subr.mxu0 0.0
  %846 = vmatpush1.msra.mxu0 0.0
  %847 = vmatprep.subr.mxu0 0.0
  %848 = vmatpush1.msra.mxu0 0.0
  %849 = vmatprep.subr.mxu0 0.0
  %850 = vmatpush1.msra.mxu0 0.0
  %851 = vmatprep.subr.mxu0 0.0
  %852 = vmatpush1.msra.mxu0 0.0
  %853 = vmatprep.mubr.f32.mxu0 0.0
  %854 = vmatmul.mubr.f32.gmra.mrb[0].mxu0 %v787
  %v855 = vpop.f32.mrb[0].mxu0
  %v856 = vadd.f32 0.0, %v855
  %v857 = vpop.f32.mrb[0].mxu0
  %v858 = vadd.f32 0.0, %v857
  %859 = vdwg.mxu0
  %860 = vmatprep.subr.mxu0 %v752
  %861 = vmatpush1.msra.mxu0 %v751
  %862 = vmatprep.subr.mxu0 %v756
  %863 = vmatpush1.msra.mxu0 %v755
  %864 = vmatprep.subr.mxu0 %v760
  %865 = vmatpush1.msra.mxu0 %v759
  %866 = vmatprep.subr.mxu0 %v764
  %867 = vmatpush1.msra.mxu0 %v763
  %868 = vmatprep.subr.mxu0 %v768
  %869 = vmatpush1.msra.mxu0 %v767
  %870 = vmatprep.subr.mxu0 %v772
  %871 = vmatpush1.msra.mxu0 %v771
  %872 = vmatprep.subr.mxu0 %v776
  %873 = vmatpush1.msra.mxu0 %v775
  %874 = vmatprep.subr.mxu0 %v780
  %875 = vmatpush1.msra.mxu0 %v779
  %876 = vmatprep.subr.mxu0 %v784
  %877 = vmatpush1.msra.mxu0 %v783
  %878 = vmatprep.subr.mxu0 0.0
  %879 = vmatpush1.msra.mxu0 0.0
  %880 = vmatprep.subr.mxu0 0.0
  %881 = vmatpush1.msra.mxu0 0.0
  %882 = vmatprep.subr.mxu0 0.0
  %883 = vmatpush1.msra.mxu0 0.0
  %884 = vmatprep.subr.mxu0 0.0
  %885 = vmatpush1.msra.mxu0 0.0
  %886 = vmatprep.subr.mxu0 0.0
  %887 = vmatpush1.msra.mxu0 0.0
  %888 = vmatprep.subr.mxu0 0.0
  %889 = vmatpush1.msra.mxu0 0.0
  %890 = vmatprep.subr.mxu0 0.0
  %891 = vmatpush1.msra.mxu0 0.0
  %892 = vmatprep.subr.mxu0 0.0
  %893 = vmatpush1.msra.mxu0 0.0
  %894 = vmatprep.subr.mxu0 0.0
  %895 = vmatpush1.msra.mxu0 0.0
  %896 = vmatprep.subr.mxu0 0.0
  %897 = vmatpush1.msra.mxu0 0.0
  %898 = vmatprep.subr.mxu0 0.0
  %899 = vmatpush1.msra.mxu0 0.0
  %900 = vmatprep.subr.mxu0 0.0
  %901 = vmatpush1.msra.mxu0 0.0
  %902 = vmatprep.subr.mxu0 0.0
  %903 = vmatpush1.msra.mxu0 0.0
  %904 = vmatprep.subr.mxu0 0.0
  %905 = vmatpush1.msra.mxu0 0.0
  %906 = vmatprep.subr.mxu0 0.0
  %907 = vmatpush1.msra.mxu0 0.0
  %908 = vmatprep.subr.mxu0 0.0
  %909 = vmatpush1.msra.mxu0 0.0
  %910 = vmatprep.subr.mxu0 0.0
  %911 = vmatpush1.msra.mxu0 0.0
  %912 = vmatprep.subr.mxu0 0.0
  %913 = vmatpush1.msra.mxu0 0.0
  %914 = vmatprep.subr.mxu0 0.0
  %915 = vmatpush1.msra.mxu0 0.0
  %916 = vmatprep.subr.mxu0 0.0
  %917 = vmatpush1.msra.mxu0 0.0
  %918 = vmatprep.subr.mxu0 0.0
  %919 = vmatpush1.msra.mxu0 0.0
  %920 = vmatprep.subr.mxu0 0.0
  %921 = vmatpush1.msra.mxu0 0.0
  %922 = vmatprep.subr.mxu0 0.0
  %923 = vmatpush1.msra.mxu0 0.0
  %924 = vmatprep.mubr.f32.mxu0 0.0
  %925 = vmatmul.mubr.f32.gmra.mrb[0].mxu0 %v787
  %v926 = vpop.f32.mrb[0].mxu0
  %v927 = vadd.f32 0.0, %v926
  %v928 = vpop.f32.mrb[0].mxu0
  %v929 = vadd.f32 0.0, %v928
  %930 = vdwg.mxu0
  %vm931 = vcmask 1043456
  %v932 = vsel %vm931, %v856, 0.0
  %v933 = vsel %vm931, %v858, 0.0
  %v934 = vadd.f32 %v932, %v933
  %v935 = vsel %vm931, %v927, 0.0
  %v936 = vadd.f32 %v934, %v935
  %v937 = vsel %vm931, %v929, 0.0
  %v938 = vadd.f32 %v936, %v937
  %939 = vadd.xlane.f32.xlu0 %v938
  %v940 = vpop.xlane.xlu0 %939
  %v941 = vmul.f32 %v940, 0.001953125
  %v942 = vsub.f32 %v856, %v941
  %v943 = vsub.f32 %v858, %v941
  %v944 = vsub.f32 %v927, %v941
  %v945 = vsub.f32 %v929, %v941
  %v946 = vmul.f32 %v942, %v942
  %v947 = vmul.f32 %v943, %v943
  %v948 = vmul.f32 %v944, %v944
  %v949 = vmul.f32 %v945, %v945
  %v950 = vsel %vm931, %v946, 0.0
  %v951 = vsel %vm931, %v947, 0.0
  %v952 = vadd.f32 %v950, %v951
  %v953 = vsel %vm931, %v948, 0.0
  %v954 = vadd.f32 %v952, %v953
  %v955 = vsel %vm931, %v949, 0.0
  %v956 = vadd.f32 %v954, %v955
  %957 = vadd.xlane.f32.xlu0 %v956
  %v958 = vpop.xlane.xlu0 %957
  %v959 = vmul.f32 %v958, 0.001953125
  %v960 = vadd.f32 %v959, 1e-05
  %v961 = vrsqrt.pop %v960
  %v962 = vmul.f32 %v961, %v156
  %964 = vset.pattern.permute.xlu0 0
  %965 = vperm.xlu0 %964, %v962
  %v966 = vpop.permute.xlu0 %965
  %v968 = vmul.f32 %v942, %v966
  %v969 = vmul.f32 %v943, %v966
  %v970 = vmul.f32 %v944, %v966
  %v971 = vmul.f32 %v945, %v966
  %973 = vset.pattern.permute.xlu0 0
  %974 = vperm.xlu0 %973, %v157
  %v975 = vpop.permute.xlu0 %974
  %v977 = vadd.f32 %v968, %v975
  %v978 = vadd.f32 %v969, %v975
  %v979 = vadd.f32 %v970, %v975
  %v980 = vadd.f32 %v971, %v975
  %v981 = vmax.f32 %v977, 0.0
  %v982 = vmax.f32 %v978, 0.0
  %v983 = vmax.f32 %v979, 0.0
  %v984 = vmax.f32 %v980, 0.0
  %985 = vst [vmem:[#allocation2 + $0x8] sm:$0xf] %v981
  %986 = vst [vmem:[#allocation2 + $0x10] sm:$0xf] %v982
  %987 = vst [vmem:[#allocation2 + $0x18] sm:$0xf] %v983
  %988 = vst [vmem:[#allocation2 + $0x20] sm:$0xf] %v984
  %v989 = vld [vmem:[%s7] sm:$0xf]
  %v990 = vld [vmem:[%s8] sm:$0xf]
  %v991 = vld [vmem:[%s9] sm:$0xf]
  %v992 = vld [vmem:[#allocation2] sm:$0xff]
  %v993 = vld [vmem:[#allocation2 + $0x8] sm:$0xff]
  %v994 = vld [vmem:[#allocation2 + $0x10] sm:$0xff]
  %v995 = vld [vmem:[#allocation2 + $0x18] sm:$0xff]
  %v996 = vld [vmem:[#allocation2 + $0x20] sm:$0xff]
  %v997 = vld [vmem:[%s3] ss:$8 sm:$0xf]
  %v999 = vlaneseq
  %v1000 = vshrl.u32 %v999, 7
  %v1001 = vsub.s32 0, %v1000
  %v1002 = vrot.slane %v997, %v1001
  %v1003 = vlaneseq
  %v1004 = vshrl.u32 %v1003, 7
  %v1005 = vsub.s32 1, %v1004
  %v1006 = vrot.slane %v997, %v1005
  %v1007 = vlaneseq
  %v1008 = vshrl.u32 %v1007, 7
  %v1009 = vsub.s32 2, %v1008
  %v1010 = vrot.slane %v997, %v1009
  %v1011 = vlaneseq
  %v1012 = vshrl.u32 %v1011, 7
  %v1013 = vsub.s32 3, %v1012
  %v1014 = vrot.slane %v997, %v1013
  %1015 = vrot.lane.b32.xlu0 %v1002, 111
  %v1016 = vpop.permute.xlu0 %1015
  %1017 = vrot.lane.b32.xlu0 %v1006, 111
  %v1018 = vpop.permute.xlu0 %1017
  %1019 = vrot.lane.b32.xlu0 %v1010, 111
  %v1020 = vpop.permute.xlu0 %1019
  %1021 = vrot.lane.b32.xlu0 %v1014, 111
  %v1022 = vpop.permute.xlu0 %1021
  %v1023 = vsel %vm189, %v1016, %v1018
  %v1024 = vsel %vm189, %v1018, %v1020
  %v1025 = vsel %vm189, %v1020, %v1022
  %v1031 = vmul.f32 %v992, %v1016
  %v1032 = vmul.f32 %v993, %v1023
  %v1033 = vmul.f32 %v994, %v1024
  %v1034 = vmul.f32 %v995, %v1025
  %v1035 = vmul.f32 %v996, %v1022
  %1041 = vrot.lane.b32.xlu0 %v1031, 17
  %v1042 = vpop.permute.xlu0 %1041
  %1043 = vrot.lane.b32.xlu0 %v1032, 17
  %v1044 = vpop.permute.xlu0 %1043
  %1045 = vrot.lane.b32.xlu0 %v1033, 17
  %v1046 = vpop.permute.xlu0 %1045
  %1047 = vrot.lane.b32.xlu0 %v1034, 17
  %v1048 = vpop.permute.xlu0 %1047
  %1049 = vrot.lane.b32.xlu0 %v1035, 17
  %v1050 = vpop.permute.xlu0 %1049
  %v1051 = vsel %vm218, %v1042, %v1044
  %v1052 = vsel %vm218, %v1044, %v1046
  %v1053 = vsel %vm218, %v1046, %v1048
  %v1054 = vsel %vm218, %v1048, %v1050
  %1059 = vst [vmem:[#allocation3] sm:$0xff] %v1051
  %1060 = vst [vmem:[#allocation3 + $0x8] sm:$0xff] %v1052
  %1061 = vst [vmem:[#allocation3 + $0x10] sm:$0xff] %v1053
  %1062 = vst [vmem:[#allocation3 + $0x18] sm:$0xff] %v1054
  %v1063 = vld [vmem:[#allocation2] sm:$0xff]
  %v1064 = vld [vmem:[#allocation2 + $0x8] sm:$0xff]
  %v1065 = vld [vmem:[#allocation2 + $0x10] sm:$0xff]
  %v1066 = vld [vmem:[#allocation2 + $0x18] sm:$0xff]
  %v1067 = vld [vmem:[#allocation2 + $0x20] sm:$0xff]
  %v1068 = vld [vmem:[%s236] ss:$8 sm:$0xf]
  %v1070 = vlaneseq
  %v1071 = vshrl.u32 %v1070, 7
  %v1072 = vsub.s32 0, %v1071
  %v1073 = vrot.slane %v1068, %v1072
  %v1074 = vlaneseq
  %v1075 = vshrl.u32 %v1074, 7
  %v1076 = vsub.s32 1, %v1075
  %v1077 = vrot.slane %v1068, %v1076
  %v1078 = vlaneseq
  %v1079 = vshrl.u32 %v1078, 7
  %v1080 = vsub.s32 2, %v1079
  %v1081 = vrot.slane %v1068, %v1080
  %v1082 = vlaneseq
  %v1083 = vshrl.u32 %v1082, 7
  %v1084 = vsub.s32 3, %v1083
  %v1085 = vrot.slane %v1068, %v1084
  %1086 = vrot.lane.b32.xlu0 %v1073, 112
  %v1087 = vpop.permute.xlu0 %1086
  %1088 = vrot.lane.b32.xlu0 %v1077, 112
  %v1089 = vpop.permute.xlu0 %1088
  %1090 = vrot.lane.b32.xlu0 %v1081, 112
  %v1091 = vpop.permute.xlu0 %1090
  %1092 = vrot.lane.b32.xlu0 %v1085, 112
  %v1093 = vpop.permute.xlu0 %1092
  %v1094 = vsel %vm263, %v1087, %v1089
  %v1095 = vsel %vm263, %v1089, %v1091
  %v1096 = vsel %vm263, %v1091, %v1093
  %v1102 = vmul.f32 %v1063, %v1087
  %v1103 = vmul.f32 %v1064, %v1094
  %v1104 = vmul.f32 %v1065, %v1095
  %v1105 = vmul.f32 %v1066, %v1096
  %v1106 = vmul.f32 %v1067, %v1093
  %1112 = vrot.lane.b32.xlu0 %v1102, 16
  %v1113 = vpop.permute.xlu0 %1112
  %1114 = vrot.lane.b32.xlu0 %v1103, 16
  %v1115 = vpop.permute.xlu0 %1114
  %1116 = vrot.lane.b32.xlu0 %v1104, 16
  %v1117 = vpop.permute.xlu0 %1116
  %1118 = vrot.lane.b32.xlu0 %v1105, 16
  %v1119 = vpop.permute.xlu0 %1118
  %1120 = vrot.lane.b32.xlu0 %v1106, 16
  %v1121 = vpop.permute.xlu0 %1120
  %v1122 = vsel %vm292, %v1113, %v1115
  %v1123 = vsel %vm292, %v1115, %v1117
  %v1124 = vsel %vm292, %v1117, %v1119
  %v1125 = vsel %vm292, %v1119, %v1121
  %1130 = vst [vmem:[#allocation3 + $0x20] sm:$0xff] %v1122
  %1131 = vst [vmem:[#allocation3 + $0x28] sm:$0xff] %v1123
  %1132 = vst [vmem:[#allocation3 + $0x30] sm:$0xff] %v1124
  %1133 = vst [vmem:[#allocation3 + $0x38] sm:$0xff] %v1125
  %v1134 = vld [vmem:[#allocation2] sm:$0xff]
  %v1135 = vld [vmem:[#allocation2 + $0x8] sm:$0xff]
  %v1136 = vld [vmem:[#allocation2 + $0x10] sm:$0xff]
  %v1137 = vld [vmem:[#allocation2 + $0x18] sm:$0xff]
  %v1138 = vld [vmem:[#allocation2 + $0x20] sm:$0xff]
  %v1139 = vld [vmem:[%s310] ss:$8 sm:$0xf]
  %v1141 = vlaneseq
  %v1142 = vshrl.u32 %v1141, 7
  %v1143 = vsub.s32 0, %v1142
  %v1144 = vrot.slane %v1139, %v1143
  %v1145 = vlaneseq
  %v1146 = vshrl.u32 %v1145, 7
  %v1147 = vsub.s32 1, %v1146
  %v1148 = vrot.slane %v1139, %v1147
  %v1149 = vlaneseq
  %v1150 = vshrl.u32 %v1149, 7
  %v1151 = vsub.s32 2, %v1150
  %v1152 = vrot.slane %v1139, %v1151
  %v1153 = vlaneseq
  %v1154 = vshrl.u32 %v1153, 7
  %v1155 = vsub.s32 3, %v1154
  %v1156 = vrot.slane %v1139, %v1155
  %1157 = vrot.lane.b32.xlu0 %v1144, 113
  %v1158 = vpop.permute.xlu0 %1157
  %1159 = vrot.lane.b32.xlu0 %v1148, 113
  %v1160 = vpop.permute.xlu0 %1159
  %1161 = vrot.lane.b32.xlu0 %v1152, 113
  %v1162 = vpop.permute.xlu0 %1161
  %1163 = vrot.lane.b32.xlu0 %v1156, 113
  %v1164 = vpop.permute.xlu0 %1163
  %v1165 = vsel %vm337, %v1158, %v1160
  %v1166 = vsel %vm337, %v1160, %v1162
  %v1167 = vsel %vm337, %v1162, %v1164
  %v1173 = vmul.f32 %v1134, %v1158
  %v1174 = vmul.f32 %v1135, %v1165
  %v1175 = vmul.f32 %v1136, %v1166
  %v1176 = vmul.f32 %v1137, %v1167
  %v1177 = vmul.f32 %v1138, %v1164
  %1183 = vrot.lane.b32.xlu0 %v1173, 15
  %v1184 = vpop.permute.xlu0 %1183
  %1185 = vrot.lane.b32.xlu0 %v1174, 15
  %v1186 = vpop.permute.xlu0 %1185
  %1187 = vrot.lane.b32.xlu0 %v1175, 15
  %v1188 = vpop.permute.xlu0 %1187
  %1189 = vrot.lane.b32.xlu0 %v1176, 15
  %v1190 = vpop.permute.xlu0 %1189
  %1191 = vrot.lane.b32.xlu0 %v1177, 15
  %v1192 = vpop.permute.xlu0 %1191
  %v1193 = vsel %vm366, %v1184, %v1186
  %v1194 = vsel %vm366, %v1186, %v1188
  %v1195 = vsel %vm366, %v1188, %v1190
  %v1196 = vsel %vm366, %v1190, %v1192
  %1201 = vst [vmem:[#allocation3 + $0x40] sm:$0xff] %v1193
  %1202 = vst [vmem:[#allocation3 + $0x48] sm:$0xff] %v1194
  %1203 = vst [vmem:[#allocation3 + $0x50] sm:$0xff] %v1195
  %1204 = vst [vmem:[#allocation3 + $0x58] sm:$0xff] %v1196
  %v1205 = vld [vmem:[#allocation2] sm:$0xff]
  %v1206 = vld [vmem:[#allocation2 + $0x8] sm:$0xff]
  %v1207 = vld [vmem:[#allocation2 + $0x10] sm:$0xff]
  %v1208 = vld [vmem:[#allocation2 + $0x18] sm:$0xff]
  %v1209 = vld [vmem:[#allocation2 + $0x20] sm:$0xff]
  %v1210 = vld [vmem:[%s384] ss:$8 sm:$0xf]
  %v1212 = vlaneseq
  %v1213 = vshrl.u32 %v1212, 7
  %v1214 = vsub.s32 0, %v1213
  %v1215 = vrot.slane %v1210, %v1214
  %v1216 = vlaneseq
  %v1217 = vshrl.u32 %v1216, 7
  %v1218 = vsub.s32 1, %v1217
  %v1219 = vrot.slane %v1210, %v1218
  %v1220 = vlaneseq
  %v1221 = vshrl.u32 %v1220, 7
  %v1222 = vsub.s32 2, %v1221
  %v1223 = vrot.slane %v1210, %v1222
  %v1224 = vlaneseq
  %v1225 = vshrl.u32 %v1224, 7
  %v1226 = vsub.s32 3, %v1225
  %v1227 = vrot.slane %v1210, %v1226
  %1228 = vrot.lane.b32.xlu0 %v1215, 127
  %v1229 = vpop.permute.xlu0 %1228
  %1230 = vrot.lane.b32.xlu0 %v1219, 127
  %v1231 = vpop.permute.xlu0 %1230
  %1232 = vrot.lane.b32.xlu0 %v1223, 127
  %v1233 = vpop.permute.xlu0 %1232
  %1234 = vrot.lane.b32.xlu0 %v1227, 127
  %v1235 = vpop.permute.xlu0 %1234
  %v1236 = vsel %vm411, %v1229, %v1231
  %v1237 = vsel %vm411, %v1231, %v1233
  %v1238 = vsel %vm411, %v1233, %v1235
  %v1244 = vmul.f32 %v1205, %v1229
  %v1245 = vmul.f32 %v1206, %v1236
  %v1246 = vmul.f32 %v1207, %v1237
  %v1247 = vmul.f32 %v1208, %v1238
  %v1248 = vmul.f32 %v1209, %v1235
  %1254 = vrot.lane.b32.xlu0 %v1244, 1
  %v1255 = vpop.permute.xlu0 %1254
  %1256 = vrot.lane.b32.xlu0 %v1245, 1
  %v1257 = vpop.permute.xlu0 %1256
  %1258 = vrot.lane.b32.xlu0 %v1246, 1
  %v1259 = vpop.permute.xlu0 %1258
  %1260 = vrot.lane.b32.xlu0 %v1247, 1
  %v1261 = vpop.permute.xlu0 %1260
  %1262 = vrot.lane.b32.xlu0 %v1248, 1
  %v1263 = vpop.permute.xlu0 %1262
  %v1264 = vsel %vm440, %v1255, %v1257
  %v1265 = vsel %vm440, %v1257, %v1259
  %v1266 = vsel %vm440, %v1259, %v1261
  %v1267 = vsel %vm440, %v1261, %v1263
  %1272 = vst [vmem:[#allocation3 + $0x60] sm:$0xff] %v1264
  %1273 = vst [vmem:[#allocation3 + $0x68] sm:$0xff] %v1265
  %1274 = vst [vmem:[#allocation3 + $0x70] sm:$0xff] %v1266
  %1275 = vst [vmem:[#allocation3 + $0x78] sm:$0xff] %v1267
  %v1276 = vld [vmem:[#allocation2 + $0x8] sm:$0xff]
  %v1277 = vld [vmem:[#allocation2 + $0x10] sm:$0xff]
  %v1278 = vld [vmem:[#allocation2 + $0x18] sm:$0xff]
  %v1279 = vld [vmem:[#allocation2 + $0x20] sm:$0xff]
  %1280 = vst [vmem:[#allocation3 + $0x80] sm:$0xff] %v1276
  %1281 = vst [vmem:[#allocation3 + $0x88] sm:$0xff] %v1277
  %1282 = vst [vmem:[#allocation3 + $0x90] sm:$0xff] %v1278
  %1283 = vst [vmem:[#allocation3 + $0x98] sm:$0xff] %v1279
  %v1284 = vld [vmem:[#allocation2 + $0x8] sm:$0xff]
  %v1285 = vld [vmem:[#allocation2 + $0x10] sm:$0xff]
  %v1286 = vld [vmem:[#allocation2 + $0x18] sm:$0xff]
  %v1287 = vld [vmem:[#allocation2 + $0x20] sm:$0xff]
  %v1288 = vld [vmem:[#allocation2 + $0x28] sm:$0xff]
  %v1289 = vld [vmem:[%s466] ss:$8 sm:$0xf]
  %v1291 = vlaneseq
  %v1292 = vshrl.u32 %v1291, 7
  %v1293 = vsub.s32 0, %v1292
  %v1294 = vrot.slane %v1289, %v1293
  %v1295 = vlaneseq
  %v1296 = vshrl.u32 %v1295, 7
  %v1297 = vsub.s32 1, %v1296
  %v1298 = vrot.slane %v1289, %v1297
  %v1299 = vlaneseq
  %v1300 = vshrl.u32 %v1299, 7
  %v1301 = vsub.s32 2, %v1300
  %v1302 = vrot.slane %v1289, %v1301
  %v1303 = vlaneseq
  %v1304 = vshrl.u32 %v1303, 7
  %v1305 = vsub.s32 3, %v1304
  %v1306 = vrot.slane %v1289, %v1305
  %1307 = vrot.lane.b32.xlu0 %v1294, 1
  %v1308 = vpop.permute.xlu0 %1307
  %1309 = vrot.lane.b32.xlu0 %v1298, 1
  %v1310 = vpop.permute.xlu0 %1309
  %1311 = vrot.lane.b32.xlu0 %v1302, 1
  %v1312 = vpop.permute.xlu0 %1311
  %1313 = vrot.lane.b32.xlu0 %v1306, 1
  %v1314 = vpop.permute.xlu0 %1313
  %v1315 = vsel %vm440, %v1308, %v1310
  %v1316 = vsel %vm440, %v1310, %v1312
  %v1317 = vsel %vm440, %v1312, %v1314
  %v1323 = vmul.f32 %v1284, %v1308
  %v1324 = vmul.f32 %v1285, %v1315
  %v1325 = vmul.f32 %v1286, %v1316
  %v1326 = vmul.f32 %v1287, %v1317
  %v1327 = vmul.f32 %v1288, %v1314
  %1333 = vrot.lane.b32.xlu0 %v1323, 127
  %v1334 = vpop.permute.xlu0 %1333
  %1335 = vrot.lane.b32.xlu0 %v1324, 127
  %v1336 = vpop.permute.xlu0 %1335
  %1337 = vrot.lane.b32.xlu0 %v1325, 127
  %v1338 = vpop.permute.xlu0 %1337
  %1339 = vrot.lane.b32.xlu0 %v1326, 127
  %v1340 = vpop.permute.xlu0 %1339
  %1341 = vrot.lane.b32.xlu0 %v1327, 127
  %v1342 = vpop.permute.xlu0 %1341
  %v1343 = vsel %vm411, %v1334, %v1336
  %v1344 = vsel %vm411, %v1336, %v1338
  %v1345 = vsel %vm411, %v1338, %v1340
  %v1346 = vsel %vm411, %v1340, %v1342
  %1351 = vst [vmem:[#allocation3 + $0xa0] sm:$0xff] %v1343
  %1352 = vst [vmem:[#allocation3 + $0xa8] sm:$0xff] %v1344
  %1353 = vst [vmem:[#allocation3 + $0xb0] sm:$0xff] %v1345
  %1354 = vst [vmem:[#allocation3 + $0xb8] sm:$0xff] %v1346
  %v1355 = vld [vmem:[#allocation2 + $0x8] sm:$0xff]
  %v1356 = vld [vmem:[#allocation2 + $0x10] sm:$0xff]
  %v1357 = vld [vmem:[#allocation2 + $0x18] sm:$0xff]
  %v1358 = vld [vmem:[#allocation2 + $0x20] sm:$0xff]
  %v1359 = vld [vmem:[#allocation2 + $0x28] sm:$0xff]
  %v1360 = vld [vmem:[%s538] ss:$8 sm:$0xf]
  %v1362 = vlaneseq
  %v1363 = vshrl.u32 %v1362, 7
  %v1364 = vsub.s32 0, %v1363
  %v1365 = vrot.slane %v1360, %v1364
  %v1366 = vlaneseq
  %v1367 = vshrl.u32 %v1366, 7
  %v1368 = vsub.s32 1, %v1367
  %v1369 = vrot.slane %v1360, %v1368
  %v1370 = vlaneseq
  %v1371 = vshrl.u32 %v1370, 7
  %v1372 = vsub.s32 2, %v1371
  %v1373 = vrot.slane %v1360, %v1372
  %v1374 = vlaneseq
  %v1375 = vshrl.u32 %v1374, 7
  %v1376 = vsub.s32 3, %v1375
  %v1377 = vrot.slane %v1360, %v1376
  %1378 = vrot.lane.b32.xlu0 %v1365, 15
  %v1379 = vpop.permute.xlu0 %1378
  %1380 = vrot.lane.b32.xlu0 %v1369, 15
  %v1381 = vpop.permute.xlu0 %1380
  %1382 = vrot.lane.b32.xlu0 %v1373, 15
  %v1383 = vpop.permute.xlu0 %1382
  %1384 = vrot.lane.b32.xlu0 %v1377, 15
  %v1385 = vpop.permute.xlu0 %1384
  %v1386 = vsel %vm366, %v1379, %v1381
  %v1387 = vsel %vm366, %v1381, %v1383
  %v1388 = vsel %vm366, %v1383, %v1385
  %v1394 = vmul.f32 %v1355, %v1379
  %v1395 = vmul.f32 %v1356, %v1386
  %v1396 = vmul.f32 %v1357, %v1387
  %v1397 = vmul.f32 %v1358, %v1388
  %v1398 = vmul.f32 %v1359, %v1385
  %1404 = vrot.lane.b32.xlu0 %v1394, 113
  %v1405 = vpop.permute.xlu0 %1404
  %1406 = vrot.lane.b32.xlu0 %v1395, 113
  %v1407 = vpop.permute.xlu0 %1406
  %1408 = vrot.lane.b32.xlu0 %v1396, 113
  %v1409 = vpop.permute.xlu0 %1408
  %1410 = vrot.lane.b32.xlu0 %v1397, 113
  %v1411 = vpop.permute.xlu0 %1410
  %1412 = vrot.lane.b32.xlu0 %v1398, 113
  %v1413 = vpop.permute.xlu0 %1412
  %v1414 = vsel %vm337, %v1405, %v1407
  %v1415 = vsel %vm337, %v1407, %v1409
  %v1416 = vsel %vm337, %v1409, %v1411
  %v1417 = vsel %vm337, %v1411, %v1413
  %1422 = vst [vmem:[#allocation3 + $0xc0] sm:$0xff] %v1414
  %1423 = vst [vmem:[#allocation3 + $0xc8] sm:$0xff] %v1415
  %1424 = vst [vmem:[#allocation3 + $0xd0] sm:$0xff] %v1416
  %1425 = vst [vmem:[#allocation3 + $0xd8] sm:$0xff] %v1417
  %v1426 = vld [vmem:[#allocation2 + $0x8] sm:$0xff]
  %v1427 = vld [vmem:[#allocation2 + $0x10] sm:$0xff]
  %v1428 = vld [vmem:[#allocation2 + $0x18] sm:$0xff]
  %v1429 = vld [vmem:[#allocation2 + $0x20] sm:$0xff]
  %v1430 = vld [vmem:[#allocation2 + $0x28] sm:$0xff]
  %v1431 = vld [vmem:[%s610] ss:$8 sm:$0xf]
  %v1433 = vlaneseq
  %v1434 = vshrl.u32 %v1433, 7
  %v1435 = vsub.s32 0, %v1434
  %v1436 = vrot.slane %v1431, %v1435
  %v1437 = vlaneseq
  %v1438 = vshrl.u32 %v1437, 7
  %v1439 = vsub.s32 1, %v1438
  %v1440 = vrot.slane %v1431, %v1439
  %v1441 = vlaneseq
  %v1442 = vshrl.u32 %v1441, 7
  %v1443 = vsub.s32 2, %v1442
  %v1444 = vrot.slane %v1431, %v1443
  %v1445 = vlaneseq
  %v1446 = vshrl.u32 %v1445, 7
  %v1447 = vsub.s32 3, %v1446
  %v1448 = vrot.slane %v1431, %v1447
  %1449 = vrot.lane.b32.xlu0 %v1436, 16
  %v1450 = vpop.permute.xlu0 %1449
  %1451 = vrot.lane.b32.xlu0 %v1440, 16
  %v1452 = vpop.permute.xlu0 %1451
  %1453 = vrot.lane.b32.xlu0 %v1444, 16
  %v1454 = vpop.permute.xlu0 %1453
  %1455 = vrot.lane.b32.xlu0 %v1448, 16
  %v1456 = vpop.permute.xlu0 %1455
  %v1457 = vsel %vm292, %v1450, %v1452
  %v1458 = vsel %vm292, %v1452, %v1454
  %v1459 = vsel %vm292, %v1454, %v1456
  %v1465 = vmul.f32 %v1426, %v1450
  %v1466 = vmul.f32 %v1427, %v1457
  %v1467 = vmul.f32 %v1428, %v1458
  %v1468 = vmul.f32 %v1429, %v1459
  %v1469 = vmul.f32 %v1430, %v1456
  %1475 = vrot.lane.b32.xlu0 %v1465, 112
  %v1476 = vpop.permute.xlu0 %1475
  %1477 = vrot.lane.b32.xlu0 %v1466, 112
  %v1478 = vpop.permute.xlu0 %1477
  %1479 = vrot.lane.b32.xlu0 %v1467, 112
  %v1480 = vpop.permute.xlu0 %1479
  %1481 = vrot.lane.b32.xlu0 %v1468, 112
  %v1482 = vpop.permute.xlu0 %1481
  %1483 = vrot.lane.b32.xlu0 %v1469, 112
  %v1484 = vpop.permute.xlu0 %1483
  %v1485 = vsel %vm263, %v1476, %v1478
  %v1486 = vsel %vm263, %v1478, %v1480
  %v1487 = vsel %vm263, %v1480, %v1482
  %v1488 = vsel %vm263, %v1482, %v1484
  %1493 = vst [vmem:[#allocation3 + $0xe0] sm:$0xff] %v1485
  %1494 = vst [vmem:[#allocation3 + $0xe8] sm:$0xff] %v1486
  %1495 = vst [vmem:[#allocation3 + $0xf0] sm:$0xff] %v1487
  %1496 = vst [vmem:[#allocation3 + $0xf8] sm:$0xff] %v1488
  %v1497 = vld [vmem:[#allocation2 + $0x8] sm:$0xff]
  %v1498 = vld [vmem:[#allocation2 + $0x10] sm:$0xff]
  %v1499 = vld [vmem:[#allocation2 + $0x18] sm:$0xff]
  %v1500 = vld [vmem:[#allocation2 + $0x20] sm:$0xff]
  %v1501 = vld [vmem:[#allocation2 + $0x28] sm:$0xff]
  %v1502 = vld [vmem:[%s682] ss:$8 sm:$0xf]
  %v1504 = vlaneseq
  %v1505 = vshrl.u32 %v1504, 7
  %v1506 = vsub.s32 0, %v1505
  %v1507 = vrot.slane %v1502, %v1506
  %v1508 = vlaneseq
  %v1509 = vshrl.u32 %v1508, 7
  %v1510 = vsub.s32 1, %v1509
  %v1511 = vrot.slane %v1502, %v1510
  %v1512 = vlaneseq
  %v1513 = vshrl.u32 %v1512, 7
  %v1514 = vsub.s32 2, %v1513
  %v1515 = vrot.slane %v1502, %v1514
  %v1516 = vlaneseq
  %v1517 = vshrl.u32 %v1516, 7
  %v1518 = vsub.s32 3, %v1517
  %v1519 = vrot.slane %v1502, %v1518
  %1520 = vrot.lane.b32.xlu0 %v1507, 17
  %v1521 = vpop.permute.xlu0 %1520
  %1522 = vrot.lane.b32.xlu0 %v1511, 17
  %v1523 = vpop.permute.xlu0 %1522
  %1524 = vrot.lane.b32.xlu0 %v1515, 17
  %v1525 = vpop.permute.xlu0 %1524
  %1526 = vrot.lane.b32.xlu0 %v1519, 17
  %v1527 = vpop.permute.xlu0 %1526
  %v1528 = vsel %vm218, %v1521, %v1523
  %v1529 = vsel %vm218, %v1523, %v1525
  %v1530 = vsel %vm218, %v1525, %v1527
  %v1536 = vmul.f32 %v1497, %v1521
  %v1537 = vmul.f32 %v1498, %v1528
  %v1538 = vmul.f32 %v1499, %v1529
  %v1539 = vmul.f32 %v1500, %v1530
  %v1540 = vmul.f32 %v1501, %v1527
  %1546 = vrot.lane.b32.xlu0 %v1536, 111
  %v1547 = vpop.permute.xlu0 %1546
  %1548 = vrot.lane.b32.xlu0 %v1537, 111
  %v1549 = vpop.permute.xlu0 %1548
  %1550 = vrot.lane.b32.xlu0 %v1538, 111
  %v1551 = vpop.permute.xlu0 %1550
  %1552 = vrot.lane.b32.xlu0 %v1539, 111
  %v1553 = vpop.permute.xlu0 %1552
  %1554 = vrot.lane.b32.xlu0 %v1540, 111
  %v1555 = vpop.permute.xlu0 %1554
  %v1556 = vsel %vm189, %v1547, %v1549
  %v1557 = vsel %vm189, %v1549, %v1551
  %v1558 = vsel %vm189, %v1551, %v1553
  %v1559 = vsel %vm189, %v1553, %v1555
  %1564 = vst [vmem:[#allocation3 + $0x100] sm:$0xff] %v1556
  %1565 = vst [vmem:[#allocation3 + $0x108] sm:$0xff] %v1557
  %1566 = vst [vmem:[#allocation3 + $0x110] sm:$0xff] %v1558
  %1567 = vst [vmem:[#allocation3 + $0x118] sm:$0xff] %v1559
  %v1568 = vld [vmem:[#allocation3] sm:$0xff]
  %v1569 = vld [vmem:[#allocation3 + $0x8] sm:$0xff]
  %v1570 = vld [vmem:[#allocation3 + $0x10] sm:$0xff]
  %v1571 = vld [vmem:[#allocation3 + $0x18] sm:$0xff]
  %v1572 = vld [vmem:[#allocation3 + $0x20] sm:$0xff]
  %v1573 = vld [vmem:[#allocation3 + $0x28] sm:$0xff]
  %v1574 = vld [vmem:[#allocation3 + $0x30] sm:$0xff]
  %v1575 = vld [vmem:[#allocation3 + $0x38] sm:$0xff]
  %v1576 = vld [vmem:[#allocation3 + $0x40] sm:$0xff]
  %v1577 = vld [vmem:[#allocation3 + $0x48] sm:$0xff]
  %v1578 = vld [vmem:[#allocation3 + $0x50] sm:$0xff]
  %v1579 = vld [vmem:[#allocation3 + $0x58] sm:$0xff]
  %v1580 = vld [vmem:[#allocation3 + $0x60] sm:$0xff]
  %v1581 = vld [vmem:[#allocation3 + $0x68] sm:$0xff]
  %v1582 = vld [vmem:[#allocation3 + $0x70] sm:$0xff]
  %v1583 = vld [vmem:[#allocation3 + $0x78] sm:$0xff]
  %v1584 = vld [vmem:[#allocation3 + $0x80] sm:$0xff]
  %v1585 = vld [vmem:[#allocation3 + $0x88] sm:$0xff]
  %v1586 = vld [vmem:[#allocation3 + $0x90] sm:$0xff]
  %v1587 = vld [vmem:[#allocation3 + $0x98] sm:$0xff]
  %v1588 = vld [vmem:[#allocation3 + $0xa0] sm:$0xff]
  %v1589 = vld [vmem:[#allocation3 + $0xa8] sm:$0xff]
  %v1590 = vld [vmem:[#allocation3 + $0xb0] sm:$0xff]
  %v1591 = vld [vmem:[#allocation3 + $0xb8] sm:$0xff]
  %v1592 = vld [vmem:[#allocation3 + $0xc0] sm:$0xff]
  %v1593 = vld [vmem:[#allocation3 + $0xc8] sm:$0xff]
  %v1594 = vld [vmem:[#allocation3 + $0xd0] sm:$0xff]
  %v1595 = vld [vmem:[#allocation3 + $0xd8] sm:$0xff]
  %v1596 = vld [vmem:[#allocation3 + $0xe0] sm:$0xff]
  %v1597 = vld [vmem:[#allocation3 + $0xe8] sm:$0xff]
  %v1598 = vld [vmem:[#allocation3 + $0xf0] sm:$0xff]
  %v1599 = vld [vmem:[#allocation3 + $0xf8] sm:$0xff]
  %v1600 = vld [vmem:[#allocation3 + $0x100] sm:$0xff]
  %v1601 = vld [vmem:[#allocation3 + $0x108] sm:$0xff]
  %v1602 = vld [vmem:[#allocation3 + $0x110] sm:$0xff]
  %v1603 = vld [vmem:[#allocation3 + $0x118] sm:$0xff]
  %v1605 = vsel %vm785, %v989, 0
  %1607 = vmatprep.subr.mxu0 %v1569
  %1608 = vmatpush1.msra.mxu0 %v1568
  %1609 = vmatprep.subr.mxu0 %v1573
  %1610 = vmatpush1.msra.mxu0 %v1572
  %1611 = vmatprep.subr.mxu0 %v1577
  %1612 = vmatpush1.msra.mxu0 %v1576
  %1613 = vmatprep.subr.mxu0 %v1581
  %1614 = vmatpush1.msra.mxu0 %v1580
  %1615 = vmatprep.subr.mxu0 %v1585
  %1616 = vmatpush1.msra.mxu0 %v1584
  %1617 = vmatprep.subr.mxu0 %v1589
  %1618 = vmatpush1.msra.mxu0 %v1588
  %1619 = vmatprep.subr.mxu0 %v1593
  %1620 = vmatpush1.msra.mxu0 %v1592
  %1621 = vmatprep.subr.mxu0 %v1597
  %1622 = vmatpush1.msra.mxu0 %v1596
  %1623 = vmatprep.subr.mxu0 %v1601
  %1624 = vmatpush1.msra.mxu0 %v1600
  %1625 = vmatprep.subr.mxu0 0.0
  %1626 = vmatpush1.msra.mxu0 0.0
  %1627 = vmatprep.subr.mxu0 0.0
  %1628 = vmatpush1.msra.mxu0 0.0
  %1629 = vmatprep.subr.mxu0 0.0
  %1630 = vmatpush1.msra.mxu0 0.0
  %1631 = vmatprep.subr.mxu0 0.0
  %1632 = vmatpush1.msra.mxu0 0.0
  %1633 = vmatprep.subr.mxu0 0.0
  %1634 = vmatpush1.msra.mxu0 0.0
  %1635 = vmatprep.subr.mxu0 0.0
  %1636 = vmatpush1.msra.mxu0 0.0
  %1637 = vmatprep.subr.mxu0 0.0
  %1638 = vmatpush1.msra.mxu0 0.0
  %1639 = vmatprep.subr.mxu0 0.0
  %1640 = vmatpush1.msra.mxu0 0.0
  %1641 = vmatprep.subr.mxu0 0.0
  %1642 = vmatpush1.msra.mxu0 0.0
  %1643 = vmatprep.subr.mxu0 0.0
  %1644 = vmatpush1.msra.mxu0 0.0
  %1645 = vmatprep.subr.mxu0 0.0
  %1646 = vmatpush1.msra.mxu0 0.0
  %1647 = vmatprep.subr.mxu0 0.0
  %1648 = vmatpush1.msra.mxu0 0.0
  %1649 = vmatprep.subr.mxu0 0.0
  %1650 = vmatpush1.msra.mxu0 0.0
  %1651 = vmatprep.subr.mxu0 0.0
  %1652 = vmatpush1.msra.mxu0 0.0
  %1653 = vmatprep.subr.mxu0 0.0
  %1654 = vmatpush1.msra.mxu0 0.0
  %1655 = vmatprep.subr.mxu0 0.0
  %1656 = vmatpush1.msra.mxu0 0.0
  %1657 = vmatprep.subr.mxu0 0.0
  %1658 = vmatpush1.msra.mxu0 0.0
  %1659 = vmatprep.subr.mxu0 0.0
  %1660 = vmatpush1.msra.mxu0 0.0
  %1661 = vmatprep.subr.mxu0 0.0
  %1662 = vmatpush1.msra.mxu0 0.0
  %1663 = vmatprep.subr.mxu0 0.0
  %1664 = vmatpush1.msra.mxu0 0.0
  %1665 = vmatprep.subr.mxu0 0.0
  %1666 = vmatpush1.msra.mxu0 0.0
  %1667 = vmatprep.subr.mxu0 0.0
  %1668 = vmatpush1.msra.mxu0 0.0
  %1669 = vmatprep.subr.mxu0 0.0
  %1670 = vmatpush1.msra.mxu0 0.0
  %1671 = vmatprep.mubr.f32.mxu0 0.0
  %1672 = vmatmul.mubr.f32.gmra.mrb[0].mxu0 %v1605
  %v1673 = vpop.f32.mrb[0].mxu0
  %v1674 = vadd.f32 0.0, %v1673
  %v1675 = vpop.f32.mrb[0].mxu0
  %v1676 = vadd.f32 0.0, %v1675
  %1677 = vdwg.mxu0
  %1678 = vmatprep.subr.mxu0 %v1571
  %1679 = vmatpush1.msra.mxu0 %v1570
  %1680 = vmatprep.subr.mxu0 %v1575
  %1681 = vmatpush1.msra.mxu0 %v1574
  %1682 = vmatprep.subr.mxu0 %v1579
  %1683 = vmatpush1.msra.mxu0 %v1578
  %1684 = vmatprep.subr.mxu0 %v1583
  %1685 = vmatpush1.msra.mxu0 %v1582
  %1686 = vmatprep.subr.mxu0 %v1587
  %1687 = vmatpush1.msra.mxu0 %v1586
  %1688 = vmatprep.subr.mxu0 %v1591
  %1689 = vmatpush1.msra.mxu0 %v1590
  %1690 = vmatprep.subr.mxu0 %v1595
  %1691 = vmatpush1.msra.mxu0 %v1594
  %1692 = vmatprep.subr.mxu0 %v1599
  %1693 = vmatpush1.msra.mxu0 %v1598
  %1694 = vmatprep.subr.mxu0 %v1603
  %1695 = vmatpush1.msra.mxu0 %v1602
  %1696 = vmatprep.subr.mxu0 0.0
  %1697 = vmatpush1.msra.mxu0 0.0
  %1698 = vmatprep.subr.mxu0 0.0
  %1699 = vmatpush1.msra.mxu0 0.0
  %1700 = vmatprep.subr.mxu0 0.0
  %1701 = vmatpush1.msra.mxu0 0.0
  %1702 = vmatprep.subr.mxu0 0.0
  %1703 = vmatpush1.msra.mxu0 0.0
  %1704 = vmatprep.subr.mxu0 0.0
  %1705 = vmatpush1.msra.mxu0 0.0
  %1706 = vmatprep.subr.mxu0 0.0
  %1707 = vmatpush1.msra.mxu0 0.0
  %1708 = vmatprep.subr.mxu0 0.0
  %1709 = vmatpush1.msra.mxu0 0.0
  %1710 = vmatprep.subr.mxu0 0.0
  %1711 = vmatpush1.msra.mxu0 0.0
  %1712 = vmatprep.subr.mxu0 0.0
  %1713 = vmatpush1.msra.mxu0 0.0
  %1714 = vmatprep.subr.mxu0 0.0
  %1715 = vmatpush1.msra.mxu0 0.0
  %1716 = vmatprep.subr.mxu0 0.0
  %1717 = vmatpush1.msra.mxu0 0.0
  %1718 = vmatprep.subr.mxu0 0.0
  %1719 = vmatpush1.msra.mxu0 0.0
  %1720 = vmatprep.subr.mxu0 0.0
  %1721 = vmatpush1.msra.mxu0 0.0
  %1722 = vmatprep.subr.mxu0 0.0
  %1723 = vmatpush1.msra.mxu0 0.0
  %1724 = vmatprep.subr.mxu0 0.0
  %1725 = vmatpush1.msra.mxu0 0.0
  %1726 = vmatprep.subr.mxu0 0.0
  %1727 = vmatpush1.msra.mxu0 0.0
  %1728 = vmatprep.subr.mxu0 0.0
  %1729 = vmatpush1.msra.mxu0 0.0
  %1730 = vmatprep.subr.mxu0 0.0
  %1731 = vmatpush1.msra.mxu0 0.0
  %1732 = vmatprep.subr.mxu0 0.0
  %1733 = vmatpush1.msra.mxu0 0.0
  %1734 = vmatprep.subr.mxu0 0.0
  %1735 = vmatpush1.msra.mxu0 0.0
  %1736 = vmatprep.subr.mxu0 0.0
  %1737 = vmatpush1.msra.mxu0 0.0
  %1738 = vmatprep.subr.mxu0 0.0
  %1739 = vmatpush1.msra.mxu0 0.0
  %1740 = vmatprep.subr.mxu0 0.0
  %1741 = vmatpush1.msra.mxu0 0.0
  %1742 = vmatprep.mubr.f32.mxu0 0.0
  %1743 = vmatmul.mubr.f32.gmra.mrb[0].mxu0 %v1605
  %v1744 = vpop.f32.mrb[0].mxu0
  %v1745 = vadd.f32 0.0, %v1744
  %v1746 = vpop.f32.mrb[0].mxu0
  %v1747 = vadd.f32 0.0, %v1746
  %1748 = vdwg.mxu0
  %v1749 = vsel %vm931, %v1674, 0.0
  %v1750 = vsel %vm931, %v1676, 0.0
  %v1751 = vadd.f32 %v1749, %v1750
  %v1752 = vsel %vm931, %v1745, 0.0
  %v1753 = vadd.f32 %v1751, %v1752
  %v1754 = vsel %vm931, %v1747, 0.0
  %v1755 = vadd.f32 %v1753, %v1754
  %1756 = vadd.xlane.f32.xlu0 %v1755
  %v1757 = vpop.xlane.xlu0 %1756
  %v1758 = vmul.f32 %v1757, 0.001953125
  %v1759 = vsub.f32 %v1674, %v1758
  %v1760 = vsub.f32 %v1676, %v1758
  %v1761 = vsub.f32 %v1745, %v1758
  %v1762 = vsub.f32 %v1747, %v1758
  %v1763 = vmul.f32 %v1759, %v1759
  %v1764 = vmul.f32 %v1760, %v1760
  %v1765 = vmul.f32 %v1761, %v1761
  %v1766 = vmul.f32 %v1762, %v1762
  %v1767 = vsel %vm931, %v1763, 0.0
  %v1768 = vsel %vm931, %v1764, 0.0
  %v1769 = vadd.f32 %v1767, %v1768
  %v1770 = vsel %vm931, %v1765, 0.0
  %v1771 = vadd.f32 %v1769, %v1770
  %v1772 = vsel %vm931, %v1766, 0.0
  %v1773 = vadd.f32 %v1771, %v1772
  %1774 = vadd.xlane.f32.xlu0 %v1773
  %v1775 = vpop.xlane.xlu0 %1774
  %v1776 = vmul.f32 %v1775, 0.001953125
  %v1777 = vadd.f32 %v1776, 1e-05
  %v1778 = vrsqrt.pop %v1777
  %v1779 = vmul.f32 %v1778, %v990
  %1781 = vset.pattern.permute.xlu0 0
  %1782 = vperm.xlu0 %1781, %v1779
  %v1783 = vpop.permute.xlu0 %1782
  %v1785 = vmul.f32 %v1759, %v1783
  %v1786 = vmul.f32 %v1760, %v1783
  %v1787 = vmul.f32 %v1761, %v1783
  %v1788 = vmul.f32 %v1762, %v1783
  %1790 = vset.pattern.permute.xlu0 0
  %1791 = vperm.xlu0 %1790, %v991
  %v1792 = vpop.permute.xlu0 %1791
  %v1794 = vadd.f32 %v1785, %v1792
  %v1795 = vadd.f32 %v1786, %v1792
  %v1796 = vadd.f32 %v1787, %v1792
  %v1797 = vadd.f32 %v1788, %v1792
  %v1798 = vmax.f32 %v1794, 0.0
  %v1799 = vmax.f32 %v1795, 0.0
  %v1800 = vmax.f32 %v1796, 0.0
  %v1801 = vmax.f32 %v1797, 0.0
  %v1806 = vcombine.low %v1798, %v1799
  %v1807 = vcombine.low %v1800, %v1801
  %1810 = vst [vmem:[%s10] sm:$0xff] %v1806
  %1811 = vst [vmem:[%s10 + $0x8] sm:$0xff] %v1807
  // Predicated region
  $region42: #{up_forward.1} parent=0 // pred_check
    _
  $region43: #{up_forward.1} parent=0 // pred_check_branch
    %1813 = sbr.rel (0) target = $region45
  $region44: #{up_forward.1} parent=0 // pred_region
    _
  $region45: #{up_forward.1} parent=0 // pred_fallthru
    _
  // Predicated region
  $region46: #{up_forward.1} parent=0 // pred_check
    _
  $region47: #{up_forward.1} parent=0 // pred_check_branch
    %1815 = sbr.rel (0) target = $region49
  $region48: #{up_forward.1} parent=0 // pred_region
    _
  $region49: #{up_forward.1} parent=0 // pred_fallthru
    _

</llo_original>
